<compile_context>
chip_gen: v5e
topology: v5e:2x2
jax: 0.10.0
libtpu: 0.0.40
codegen_flags: <defaults>
</compile_context>

<pallas_src>
import functools

import jax
import jax.numpy as jnp
from jax.experimental import pallas as pl
from jax.experimental.pallas import tpu as pltpu


def _conv3x3_relu_kernel(x_ref, w_ref, b_ref, o_ref, col_ref, *, W, Cin, TH):
    """One (batch, row-tile) grid step.

    x_ref:   (1, H+2, W+2, Cin)  bf16  whole zero-padded image (re-used across row tiles)
    w_ref:   (9*Cin, CPAD)       bf16  im2col weights, Cout zero-padded to CPAD lanes
    b_ref:   (1, CPAD)           f32   bias (padded)
    o_ref:   (1, TH*W, CPAD)     f32   one row tile of the flattened (H*W, CPAD) output
    col_ref: (TH, W, 9*Cin)      f32   VMEM scratch holding the im2col patches
    """
    h = pl.program_id(1)
    row0 = pl.multiple_of(h * TH, TH)          # first (padded) input row of this tile

    # Build the im2col patch tensor once per tile:
    #   col[i, w, (kh*3+kw)*Cin + c] = x_pad[row0 + i + kh, w + kw, c]
    for kh in range(3):
        for kw in range(3):
            t = kh * 3 + kw
            win = x_ref[0, pl.ds(row0 + kh, TH), kw:kw + W, :]      # (TH, W, Cin)
            col_ref[:, :, t * Cin:(t + 1) * Cin] = win.astype(col_ref.dtype)

    patches = col_ref[...].reshape(TH * W, 9 * Cin).astype(jnp.bfloat16)
    # Single MXU push: (TH*W, 9*Cin) @ (9*Cin, CPAD) with f32 accumulation.
    acc = jnp.dot(patches, w_ref[...], preferred_element_type=jnp.float32)
    acc = jnp.maximum(acc + b_ref[...], 0.0)                         # bias + ReLU in f32
    o_ref[0, :, :] = acc.astype(o_ref.dtype)                         # lane-dense store


def _pick_row_tile(h, w, max_rows=128):
    """Largest divisor `th` of h with th*w <= max_rows (and th*w % 8 == 0 so the
    flattened output tile keeps a legal sublane extent). Bounds the f32 accumulator
    and im2col scratch regardless of image size."""
    divisors = [t for t in range(1, h + 1) if h % t == 0 and (t * w) % 8 == 0]
    if not divisors:
        return h
    under = [t for t in divisors if t * w <= max_rows]
    return max(under) if under else min(divisors)


def bottleneck_layer(x_nchw, weight_hwio, bias, *, row_tile=None):
    """Conv2d(3x3, stride=1, padding=1) + ReLU (PyTorch BottleneckLayer forward).

    x_nchw:      (N, Cin, H, W)    float32 (PyTorch layout)
    weight_hwio: (3, 3, Cin, Cout) float32
    bias:        (Cout,)           float32
    returns:     (N, Cout, H, W)   float32
    """
    N, Cin, H, W = x_nchw.shape
    Cout = weight_hwio.shape[-1]
    CPAD = ((Cout + 127) // 128) * 128          # lane-dense output channels

    TH = _pick_row_tile(H, W) if row_tile is None else row_tile
    assert H % TH == 0
    HT = H // TH

    # Layout glue (fuses into a single XLA copy): cast bf16, NCHW->NHWC, zero-pad H/W.
    # TODO(synk): accept NHWC inputs / fold the 1-pixel halo into the kernel with
    # masked edge taps to drop this extra HBM pass at production sizes.
    x_pad = jnp.pad(
        jnp.transpose(x_nchw.astype(jnp.bfloat16), (0, 2, 3, 1)),
        ((0, 0), (1, 1), (1, 1), (0, 0)))

    # im2col weights: HWIO -> (9*Cin, Cout), zero-pad Cout to CPAD lanes, bf16.
    w2d = jnp.pad(weight_hwio.reshape(9 * Cin, Cout),
                  ((0, 0), (0, CPAD - Cout))).astype(jnp.bfloat16)
    b2d = jnp.pad(bias, (0, CPAD - Cout)).reshape(1, CPAD).astype(jnp.float32)

    kernel = functools.partial(_conv3x3_relu_kernel, W=W, Cin=Cin, TH=TH)

    out_flat = pl.pallas_call(
        kernel,
        out_shape=jax.ShapeDtypeStruct((N, H * W, CPAD), jnp.float32),
        grid_spec=pltpu.PrefetchScalarGridSpec(
            num_scalar_prefetch=0,
            grid=(N, HT),
            in_specs=[
                # Whole padded image per batch element; the index map ignores the
                # row-tile index so it is DMA'd once per n and re-used across tiles.
                pl.BlockSpec((1, H + 2, W + 2, Cin), lambda n, h: (n, 0, 0, 0)),
                pl.BlockSpec((9 * Cin, CPAD), lambda n, h: (0, 0)),
                pl.BlockSpec((1, CPAD), lambda n, h: (0, 0)),
            ],
            out_specs=pl.BlockSpec((1, TH * W, CPAD), lambda n, h: (n, h, 0)),
            scratch_shapes=[pltpu.VMEM((TH, W, 9 * Cin), jnp.float32)],
        ),
        compiler_params=pltpu.CompilerParams(
            dimension_semantics=("parallel", "parallel"),
            # Headroom under v7x's 64 MiB physical VMEM; also raises the smaller
            # default scoped limits on v5e/v6e.
            vmem_limit_bytes=48 * 1024 * 1024,
        ),
    )(x_pad, w2d, b2d)

    # Drop the channel padding and return the PyTorch NCHW layout.
    out = out_flat[:, :, :Cout].reshape(N, H, W, Cout)
    return jnp.transpose(out, (0, 3, 1, 2))


if __name__ == "__main__":
    key = jax.random.PRNGKey(0)
    k_x, k_w, k_b = jax.random.split(key, 3)

    N, Cin, Cout, H, W = 2, 4, 8, 16, 16

    x = jax.random.normal(k_x, (N, Cin, H, W), dtype=jnp.float32)
    # Synthetic parameters stored directly as HWIO (torch Conv2d weight is OIHW).
    weight = jax.random.normal(k_w, (3, 3, Cin, Cout), dtype=jnp.float32) * 0.1
    bias = jax.random.normal(k_b, (Cout,), dtype=jnp.float32) * 0.1

    fn = jax.jit(bottleneck_layer)
    out = jax.block_until_ready(fn(x, weight, bias))

    # Cross-check against XLA's conv using the same bf16-rounded operands.
    x_bf = x.astype(jnp.bfloat16).astype(jnp.float32)
    w_bf = weight.astype(jnp.bfloat16).astype(jnp.float32)
    ref = jax.lax.conv_general_dilated(
        x_bf, jnp.transpose(w_bf, (3, 2, 0, 1)),      # HWIO -> OIHW
        window_strides=(1, 1), padding=((1, 1), (1, 1)),
        dimension_numbers=("NCHW", "OIHW", "NCHW"))
    ref = jnp.maximum(ref + bias[None, :, None, None], 0.0)

    assert out.shape == (N, Cout, H, W)
    assert jnp.allclose(out, ref, atol=2e-2, rtol=2e-2), \
        float(jnp.max(jnp.abs(out - ref)))

    print("KERNEL_OK")
</pallas_src>

<mosaic_0001>
module attributes {stable_mosaic.version = 11 : i64} {
  func.func @_conv3x3_relu_kernel(%arg0: i32, %arg1: i32, %arg2: memref<1x18x18x4xbf16, #tpu.memory_space<vmem>>, %arg3: memref<36x128xbf16, #tpu.memory_space<vmem>>, %arg4: memref<1x128xf32, #tpu.memory_space<vmem>>, %arg5: memref<1x128x128xf32, #tpu.memory_space<vmem>>, %arg6: memref<8x16x36xf32, #tpu.memory_space<vmem>>) attributes {dimension_semantics = [#tpu.dimension_semantics<parallel>, #tpu.dimension_semantics<parallel>], iteration_bounds = array<i64: 2, 2>, scalar_prefetch = 0 : i64, scratch_operands = 1 : i64, tpu.core_type = #tpu.core_type<tc>, window_params = [{transform_indices = @transform_0, window_bounds = array<i64: 1, 18, 18, 4>}, {pipeline_mode = #tpu.pipeline_mode<synchronous>, transform_indices = @transform_1, window_bounds = array<i64: 36, 128>}, {pipeline_mode = #tpu.pipeline_mode<synchronous>, transform_indices = @transform_2, window_bounds = array<i64: 1, 128>}, {transform_indices = @transform_3, window_bounds = array<i64: 1, 128, 128>}]} {
    %c8_i32 = arith.constant 8 : i32
    %0 = arith.muli %arg1, %c8_i32 : i32
    %1 = tpu.assume_multiple %0, 8 : i32
    %c0_i32 = arith.constant 0 : i32
    %2 = arith.addi %1, %c0_i32 : i32
    %c0 = arith.constant 0 : index
    %3 = arith.index_cast %2 : i32 to index
    %c0_0 = arith.constant 0 : index
    %c0_1 = arith.constant 0 : index
    %4 = vector.load %arg2[%c0, %3, %c0_0, %c0_1] : memref<1x18x18x4xbf16, #tpu.memory_space<vmem>>, vector<1x8x16x4xbf16>
    %5 = vector.shape_cast %4 : vector<1x8x16x4xbf16> to vector<8x16x4xbf16>
    %6 = arith.extf %5 : vector<8x16x4xbf16> to vector<8x16x4xf32>
    %c0_2 = arith.constant 0 : index
    %c0_3 = arith.constant 0 : index
    %c0_4 = arith.constant 0 : index
    %7 = vector.load %arg6[%c0_2, %c0_3, %c0_4] : memref<8x16x36xf32, #tpu.memory_space<vmem>>, vector<8x16x4xf32>
    tpu.vector_store %arg6[%c0_2, %c0_3, %c0_4], %6 {strides = array<i32>} : memref<8x16x36xf32, #tpu.memory_space<vmem>>, vector<8x16x4xf32>,
    %c0_i32_5 = arith.constant 0 : i32
    %8 = arith.addi %1, %c0_i32_5 : i32
    %c0_6 = arith.constant 0 : index
    %9 = arith.index_cast %8 : i32 to index
    %c1 = arith.constant 1 : index
    %c0_7 = arith.constant 0 : index
    %10 = vector.load %arg2[%c0_6, %9, %c1, %c0_7] : memref<1x18x18x4xbf16, #tpu.memory_space<vmem>>, vector<1x8x16x4xbf16>
    %11 = vector.shape_cast %10 : vector<1x8x16x4xbf16> to vector<8x16x4xbf16>
    %12 = arith.extf %11 : vector<8x16x4xbf16> to vector<8x16x4xf32>
    %c0_8 = arith.constant 0 : index
    %c0_9 = arith.constant 0 : index
    %c4 = arith.constant 4 : index
    %13 = vector.load %arg6[%c0_8, %c0_9, %c4] : memref<8x16x36xf32, #tpu.memory_space<vmem>>, vector<8x16x4xf32>
    tpu.vector_store %arg6[%c0_8, %c0_9, %c4], %12 {strides = array<i32>} : memref<8x16x36xf32, #tpu.memory_space<vmem>>, vector<8x16x4xf32>,
    %c0_i32_10 = arith.constant 0 : i32
    %14 = arith.addi %1, %c0_i32_10 : i32
    %c0_11 = arith.constant 0 : index
    %15 = arith.index_cast %14 : i32 to index
    %c2 = arith.constant 2 : index
    %c0_12 = arith.constant 0 : index
    %16 = vector.load %arg2[%c0_11, %15, %c2, %c0_12] : memref<1x18x18x4xbf16, #tpu.memory_space<vmem>>, vector<1x8x16x4xbf16>
    %17 = vector.shape_cast %16 : vector<1x8x16x4xbf16> to vector<8x16x4xbf16>
    %18 = arith.extf %17 : vector<8x16x4xbf16> to vector<8x16x4xf32>
    %c0_13 = arith.constant 0 : index
    %c0_14 = arith.constant 0 : index
    %c8 = arith.constant 8 : index
    %19 = vector.load %arg6[%c0_13, %c0_14, %c8] : memref<8x16x36xf32, #tpu.memory_space<vmem>>, vector<8x16x4xf32>
    tpu.vector_store %arg6[%c0_13, %c0_14, %c8], %18 {strides = array<i32>} : memref<8x16x36xf32, #tpu.memory_space<vmem>>, vector<8x16x4xf32>,
    %c1_i32 = arith.constant 1 : i32
    %20 = arith.addi %1, %c1_i32 : i32
    %c0_15 = arith.constant 0 : index
    %21 = arith.index_cast %20 : i32 to index
    %c0_16 = arith.constant 0 : index
    %c0_17 = arith.constant 0 : index
    %22 = vector.load %arg2[%c0_15, %21, %c0_16, %c0_17] : memref<1x18x18x4xbf16, #tpu.memory_space<vmem>>, vector<1x8x16x4xbf16>
    %23 = vector.shape_cast %22 : vector<1x8x16x4xbf16> to vector<8x16x4xbf16>
    %24 = arith.extf %23 : vector<8x16x4xbf16> to vector<8x16x4xf32>
    %c0_18 = arith.constant 0 : index
    %c0_19 = arith.constant 0 : index
    %c12 = arith.constant 12 : index
    %25 = vector.load %arg6[%c0_18, %c0_19, %c12] : memref<8x16x36xf32, #tpu.memory_space<vmem>>, vector<8x16x4xf32>
    tpu.vector_store %arg6[%c0_18, %c0_19, %c12], %24 {strides = array<i32>} : memref<8x16x36xf32, #tpu.memory_space<vmem>>, vector<8x16x4xf32>,
    %c1_i32_20 = arith.constant 1 : i32
    %26 = arith.addi %1, %c1_i32_20 : i32
    %c0_21 = arith.constant 0 : index
    %27 = arith.index_cast %26 : i32 to index
    %c1_22 = arith.constant 1 : index
    %c0_23 = arith.constant 0 : index
    %28 = vector.load %arg2[%c0_21, %27, %c1_22, %c0_23] : memref<1x18x18x4xbf16, #tpu.memory_space<vmem>>, vector<1x8x16x4xbf16>
    %29 = vector.shape_cast %28 : vector<1x8x16x4xbf16> to vector<8x16x4xbf16>
    %30 = arith.extf %29 : vector<8x16x4xbf16> to vector<8x16x4xf32>
    %c0_24 = arith.constant 0 : index
    %c0_25 = arith.constant 0 : index
    %c16 = arith.constant 16 : index
    %31 = vector.load %arg6[%c0_24, %c0_25, %c16] : memref<8x16x36xf32, #tpu.memory_space<vmem>>, vector<8x16x4xf32>
    tpu.vector_store %arg6[%c0_24, %c0_25, %c16], %30 {strides = array<i32>} : memref<8x16x36xf32, #tpu.memory_space<vmem>>, vector<8x16x4xf32>,
    %c1_i32_26 = arith.constant 1 : i32
    %32 = arith.addi %1, %c1_i32_26 : i32
    %c0_27 = arith.constant 0 : index
    %33 = arith.index_cast %32 : i32 to index
    %c2_28 = arith.constant 2 : index
    %c0_29 = arith.constant 0 : index
    %34 = vector.load %arg2[%c0_27, %33, %c2_28, %c0_29] : memref<1x18x18x4xbf16, #tpu.memory_space<vmem>>, vector<1x8x16x4xbf16>
    %35 = vector.shape_cast %34 : vector<1x8x16x4xbf16> to vector<8x16x4xbf16>
    %36 = arith.extf %35 : vector<8x16x4xbf16> to vector<8x16x4xf32>
    %c0_30 = arith.constant 0 : index
    %c0_31 = arith.constant 0 : index
    %c20 = arith.constant 20 : index
    %37 = vector.load %arg6[%c0_30, %c0_31, %c20] : memref<8x16x36xf32, #tpu.memory_space<vmem>>, vector<8x16x4xf32>
    tpu.vector_store %arg6[%c0_30, %c0_31, %c20], %36 {strides = array<i32>} : memref<8x16x36xf32, #tpu.memory_space<vmem>>, vector<8x16x4xf32>,
    %c2_i32 = arith.constant 2 : i32
    %38 = arith.addi %1, %c2_i32 : i32
    %c0_32 = arith.constant 0 : index
    %39 = arith.index_cast %38 : i32 to index
    %c0_33 = arith.constant 0 : index
    %c0_34 = arith.constant 0 : index
    %40 = vector.load %arg2[%c0_32, %39, %c0_33, %c0_34] : memref<1x18x18x4xbf16, #tpu.memory_space<vmem>>, vector<1x8x16x4xbf16>
    %41 = vector.shape_cast %40 : vector<1x8x16x4xbf16> to vector<8x16x4xbf16>
    %42 = arith.extf %41 : vector<8x16x4xbf16> to vector<8x16x4xf32>
    %c0_35 = arith.constant 0 : index
    %c0_36 = arith.constant 0 : index
    %c24 = arith.constant 24 : index
    %43 = vector.load %arg6[%c0_35, %c0_36, %c24] : memref<8x16x36xf32, #tpu.memory_space<vmem>>, vector<8x16x4xf32>
    tpu.vector_store %arg6[%c0_35, %c0_36, %c24], %42 {strides = array<i32>} : memref<8x16x36xf32, #tpu.memory_space<vmem>>, vector<8x16x4xf32>,
    %c2_i32_37 = arith.constant 2 : i32
    %44 = arith.addi %1, %c2_i32_37 : i32
    %c0_38 = arith.constant 0 : index
    %45 = arith.index_cast %44 : i32 to index
    %c1_39 = arith.constant 1 : index
    %c0_40 = arith.constant 0 : index
    %46 = vector.load %arg2[%c0_38, %45, %c1_39, %c0_40] : memref<1x18x18x4xbf16, #tpu.memory_space<vmem>>, vector<1x8x16x4xbf16>
    %47 = vector.shape_cast %46 : vector<1x8x16x4xbf16> to vector<8x16x4xbf16>
    %48 = arith.extf %47 : vector<8x16x4xbf16> to vector<8x16x4xf32>
    %c0_41 = arith.constant 0 : index
    %c0_42 = arith.constant 0 : index
    %c28 = arith.constant 28 : index
    %49 = vector.load %arg6[%c0_41, %c0_42, %c28] : memref<8x16x36xf32, #tpu.memory_space<vmem>>, vector<8x16x4xf32>
    tpu.vector_store %arg6[%c0_41, %c0_42, %c28], %48 {strides = array<i32>} : memref<8x16x36xf32, #tpu.memory_space<vmem>>, vector<8x16x4xf32>,
    %c2_i32_43 = arith.constant 2 : i32
    %50 = arith.addi %1, %c2_i32_43 : i32
    %c0_44 = arith.constant 0 : index
    %51 = arith.index_cast %50 : i32 to index
    %c2_45 = arith.constant 2 : index
    %c0_46 = arith.constant 0 : index
    %52 = vector.load %arg2[%c0_44, %51, %c2_45, %c0_46] : memref<1x18x18x4xbf16, #tpu.memory_space<vmem>>, vector<1x8x16x4xbf16>
    %53 = vector.shape_cast %52 : vector<1x8x16x4xbf16> to vector<8x16x4xbf16>
    %54 = arith.extf %53 : vector<8x16x4xbf16> to vector<8x16x4xf32>
    %c0_47 = arith.constant 0 : index
    %c0_48 = arith.constant 0 : index
    %c32 = arith.constant 32 : index
    %55 = vector.load %arg6[%c0_47, %c0_48, %c32] : memref<8x16x36xf32, #tpu.memory_space<vmem>>, vector<8x16x4xf32>
    tpu.vector_store %arg6[%c0_47, %c0_48, %c32], %54 {strides = array<i32>} : memref<8x16x36xf32, #tpu.memory_space<vmem>>, vector<8x16x4xf32>,
    %c0_49 = arith.constant 0 : index
    %c0_50 = arith.constant 0 : index
    %c0_51 = arith.constant 0 : index
    %56 = vector.load %arg6[%c0_49, %c0_50, %c0_51] : memref<8x16x36xf32, #tpu.memory_space<vmem>>, vector<8x16x36xf32>
    %57 = vector.shape_cast %56 : vector<8x16x36xf32> to vector<128x36xf32>
    %58 = arith.truncf %57 : vector<128x36xf32> to vector<128x36xbf16>
    %c0_52 = arith.constant 0 : index
    %c0_53 = arith.constant 0 : index
    %59 = vector.load %arg3[%c0_52, %c0_53] : memref<36x128xbf16, #tpu.memory_space<vmem>>, vector<36x128xbf16>
    %cst = arith.constant dense<0.000000e+00> : vector<128x128xf32>
    %60 = tpu.matmul %58, %59, %cst {dimension_numbers = #tpu.dot_dimension_numbers<[1], [0], [0], [1], [0, 0, 1, 1], [], []>} : vector<128x36xbf16>, vector<36x128xbf16>, vector<128x128xf32> -> vector<128x128xf32>
    %c0_54 = arith.constant 0 : index
    %c0_55 = arith.constant 0 : index
    %61 = vector.load %arg4[%c0_54, %c0_55] : memref<1x128xf32, #tpu.memory_space<vmem>>, vector<1x128xf32>
    %62 = vector.broadcast %61 : vector<1x128xf32> to vector<128x128xf32>
    %63 = arith.addf %60, %62 : vector<128x128xf32>
    %cst_56 = arith.constant 0.000000e+00 : f32
    %64 = vector.broadcast %cst_56 : f32 to vector<128x128xf32>
    %65 = arith.maximumf %63, %64 : vector<128x128xf32>
    %c0_57 = arith.constant 0 : index
    %c0_58 = arith.constant 0 : index
    %c0_59 = arith.constant 0 : index
    %66 = vector.load %arg5[%c0_57, %c0_58, %c0_59] : memref<1x128x128xf32, #tpu.memory_space<vmem>>, vector<1x128x128xf32>
    %67 = vector.shape_cast %66 : vector<1x128x128xf32> to vector<128x128xf32>
    %68 = vector.shape_cast %65 : vector<128x128xf32> to vector<1x128x128xf32>
    tpu.vector_store %arg5[%c0_57, %c0_58, %c0_59], %68 {strides = array<i32>} : memref<1x128x128xf32, #tpu.memory_space<vmem>>, vector<1x128x128xf32>,
    return
  }
  func.func @transform_0(%arg0: i32, %arg1: i32) -> (i32, i32, i32, i32) {
    %c0_i32 = arith.constant 0 : i32
    %c0_i32_0 = arith.constant 0 : i32
    %c0_i32_1 = arith.constant 0 : i32
    %c0_i32_2 = arith.constant 0 : i32
    return %arg0, %c0_i32, %c0_i32_0, %c0_i32_1 : i32, i32, i32, i32
  }
  func.func @transform_1(%arg0: i32, %arg1: i32) -> (i32, i32) {
    %c0_i32 = arith.constant 0 : i32
    %c0_i32_0 = arith.constant 0 : i32
    %c0_i32_1 = arith.constant 0 : i32
    return %c0_i32, %c0_i32_0 : i32, i32
  }
  func.func @transform_2(%arg0: i32, %arg1: i32) -> (i32, i32) {
    %c0_i32 = arith.constant 0 : i32
    %c0_i32_0 = arith.constant 0 : i32
    %c0_i32_1 = arith.constant 0 : i32
    return %c0_i32, %c0_i32_0 : i32, i32
  }
  func.func @transform_3(%arg0: i32, %arg1: i32) -> (i32, i32, i32) {
    %c0_i32 = arith.constant 0 : i32
    %c0_i32_0 = arith.constant 0 : i32
    return %arg0, %arg1, %c0_i32 : i32, i32, i32
  }
}

</mosaic_0001>

<llo_original>
// kernel: bottleneck_layer.1
$region0: #{bottleneck_layer.1}
  #allocation0 [shape = 'u32[]', space=smem, size = 0x4, offset = 0x4, fixed_abs, tag = 'smem constant byte address 0x4 - core index']
  #allocation1 [shape = 'u32[72,128]{1,0:T(1,128)}', space=vmem, size = 0x9000, scoped, tag = 'internal scratch']
  #allocation2 [shape = 'f32[8,16,36]{2,1,0:T(8,128)}', space=vmem, size = 0x10000, scoped, tag = 'scratch operand']
  %s0 = inlined_call_operand.vmem [shape: bf16[2,18,18,4], index: 0, kind: input, shape index: {}]
  %s1 = inlined_call_operand.vmem [shape: bf16[36,128], index: 1, kind: input, shape index: {}]
  %s2 = inlined_call_operand.vmem [shape: f32[1,128], index: 2, kind: input, shape index: {}]
  %s3 = inlined_call_operand.vmem [shape: f32[2,256,128], index: 3, kind: output, shape index: {}]
  %s4 = sld [smem:[#allocation0]]
  $region45: #{bottleneck_layer.1} parent=0
    _
  %s6 = ssub.s32 1, %s4
  %s7 = scalar_select 0, %s6, %s4
  loop: start=0, step=1, limit=6
  $region2: #{bottleneck_layer.1} parent=0 // loop_pre_header
    _
  $region3: #{bottleneck_layer.1} parent=0 // loop_header
    %s9 = sphi 0, %s13
    %p10 = scmp.ge.s32.totalorder %s9, 6
    %s16 = sphi 0, %s28
    %s17 = sphi 0, %s24
    %s18 = sphi 0, %s16
    %s19 = sphi 0, %s17
    %s20 = sphi 0, %s18
    %s21 = sphi 0, %s19
    %s31 = sphi 0, %s33
    %s34 = sphi 0, %s31
    %s35 = sphi 0, %s34
    %s51 = sphi 0, %s35
    %s55 = sphi 0, %s55
    %s57 = sphi 0, %s55
    %s58 = sphi 0, %s57
    %s72 = sphi 0, %s58
    %s76 = sphi 0, %s76
    %s78 = sphi 0, %s76
    %s79 = sphi 0, %s78
    %s93 = sphi 0, %s79
    %s101 = sphi 0, %s103
    %s104 = sphi 0, %s101
    %s105 = sphi 0, %s104
    %s121 = sphi 0, %s105
  $region4: #{bottleneck_layer.1} parent=0 // loop_header_branch
    %12 = sbr.rel (%p10) target = $region8
  $region5: #{bottleneck_layer.1} parent=0 // loop_body
    %s14 = ssub.s32 %s9, 1
    %s15 = ssub.s32 %s9, 2
    %s22 = sadd.s32 1, %s17
    %p23 = scmp.ge.s32.totalorder %s22, 2
    %s24 = scalar_select %p23, 0, %s22
    %s25 = sadd.s32 1, %s16
    %s26 = scalar_select %p23, %s25, %s16
    %p27 = scmp.ge.s32.totalorder %s26, 2
    %s28 = scalar_select %p27, 0, %s26
    %s29 = ssub.s32 %s16, %s28
    %p30 = scmp.eq.s32.totalorder %s29, 0
    %s32 = sadd.s32 %s31, 1
    %s33 = scalar_select %p30, %s31, %s32
    %p36 = pneg %p30
    %p37 = scmp.eq.s32.totalorder %s9, 3
    %p38 = por %p36, %p37
    %p39 = scmp.ne.s32.totalorder %s31, %s34
    %p40 = scmp.eq.s32.totalorder %s9, 0
    %p41 = por %p39, %p40
    %p42 = scmp.ne.s32.totalorder %s31, %s34
    %p43 = scmp.eq.s32.totalorder %s14, 3
    %p44 = por %p42, %p43
    %p45 = scmp.ne.s32.totalorder %s34, %s35
    %p46 = scmp.eq.s32.totalorder %s14, 0
    %p47 = por %p45, %p46
    %p48 = scmp.ne.s32.totalorder %s34, %s35
    %p49 = scmp.eq.s32.totalorder %s15, 3
    %p50 = por %p48, %p49
    %p52 = scmp.ne.s32.totalorder %s35, %s51
    %p53 = scmp.eq.s32.totalorder %s15, 0
    %p54 = por %p52, %p53
    %s56 = sadd.s32 %s55, 1
    %p59 = scmp.eq.s32.totalorder %s9, 3
    %p60 = scmp.ne.s32.totalorder %s55, %s57
    %p61 = scmp.eq.s32.totalorder %s9, 0
    %p62 = por %p60, %p61
    %p63 = scmp.ne.s32.totalorder %s55, %s57
    %p64 = scmp.eq.s32.totalorder %s14, 3
    %p65 = por %p63, %p64
    %p66 = scmp.ne.s32.totalorder %s57, %s58
    %p67 = scmp.eq.s32.totalorder %s14, 0
    %p68 = por %p66, %p67
    %p69 = scmp.ne.s32.totalorder %s57, %s58
    %p70 = scmp.eq.s32.totalorder %s15, 3
    %p71 = por %p69, %p70
    %p73 = scmp.ne.s32.totalorder %s58, %s72
    %p74 = scmp.eq.s32.totalorder %s15, 0
    %p75 = por %p73, %p74
    %s77 = sadd.s32 %s76, 1
    %p80 = scmp.eq.s32.totalorder %s9, 3
    %p81 = scmp.ne.s32.totalorder %s76, %s78
    %p82 = scmp.eq.s32.totalorder %s9, 0
    %p83 = por %p81, %p82
    %p84 = scmp.ne.s32.totalorder %s76, %s78
    %p85 = scmp.eq.s32.totalorder %s14, 3
    %p86 = por %p84, %p85
    %p87 = scmp.ne.s32.totalorder %s78, %s79
    %p88 = scmp.eq.s32.totalorder %s14, 0
    %p89 = por %p87, %p88
    %p90 = scmp.ne.s32.totalorder %s78, %s79
    %p91 = scmp.eq.s32.totalorder %s15, 3
    %p92 = por %p90, %p91
    %p94 = scmp.ne.s32.totalorder %s79, %s93
    %p95 = scmp.eq.s32.totalorder %s15, 0
    %p96 = por %p94, %p95
    %s97 = ssub.s32 %s16, %s28
    %s98 = ssub.s32 %s17, %s24
    %s99 = sor.u32 %s97, %s98
    %p100 = scmp.eq.s32.totalorder %s99, 0
    %s102 = sadd.s32 %s101, 1
    %s103 = scalar_select %p100, %s101, %s102
    %p106 = pneg %p100
    %p107 = scmp.eq.s32.totalorder %s9, 3
    %p108 = por %p106, %p107
    %p109 = scmp.ne.s32.totalorder %s101, %s104
    %p110 = scmp.eq.s32.totalorder %s9, 0
    %p111 = por %p109, %p110
    %p112 = scmp.ne.s32.totalorder %s101, %s104
    %p113 = scmp.eq.s32.totalorder %s14, 3
    %p114 = por %p112, %p113
    %p115 = scmp.ne.s32.totalorder %s104, %s105
    %p116 = scmp.eq.s32.totalorder %s14, 0
    %p117 = por %p115, %p116
    %p118 = scmp.ne.s32.totalorder %s104, %s105
    %p119 = scmp.eq.s32.totalorder %s15, 3
    %p120 = por %p118, %p119
    %p122 = scmp.ne.s32.totalorder %s105, %s121
    %p123 = scmp.eq.s32.totalorder %s15, 0
    %p124 = por %p122, %p123
    %p125 = scmp.le.s32.totalorder 1, %s9
    %p126 = scmp.lt.s32.totalorder %s9, 5
    %p127 = pnand %p125, %p126
    %p128 = pneg %p127
    // Predicated region
    $region9: #{bottleneck_layer.1} parent=5 // pred_check
      _
    $region10: #{bottleneck_layer.1} parent=5 // pred_check_branch
      %130 = sbr.rel (%p127) target = $region12
    $region11: #{bottleneck_layer.1} parent=5 // pred_region
      %s131 = ssub.s32 %s9, 1
      // Predicated region
      $region13: #{bottleneck_layer.1} parent=11 // pred_check
        %p132 = pneg %p68
      $region14: #{bottleneck_layer.1} parent=11 // pred_check_branch
        %134 = sbr.rel (%p132) target = $region16
      $region15: #{bottleneck_layer.1} parent=11 // pred_region
        _
      $region16: #{bottleneck_layer.1} parent=11 // pred_fallthru
        _
      // Predicated region
      $region17: #{bottleneck_layer.1} parent=11 // pred_check
        %p135 = pneg %p89
      $region18: #{bottleneck_layer.1} parent=11 // pred_check_branch
        %137 = sbr.rel (%p135) target = $region20
      $region19: #{bottleneck_layer.1} parent=11 // pred_region
        _
      $region20: #{bottleneck_layer.1} parent=11 // pred_fallthru
        _
    $region12: #{bottleneck_layer.1} parent=5 // pred_fallthru
      _
    %p138 = scmp.lt.s32.totalorder %s9, 4
    // Predicated region
    $region21: #{bottleneck_layer.1} parent=5 // pred_check
      %p139 = pneg %p138
    $region22: #{bottleneck_layer.1} parent=5 // pred_check_branch
      %141 = sbr.rel (%p139) target = $region24
    $region23: #{bottleneck_layer.1} parent=5 // pred_region
      // Predicated region
      $region25: #{bottleneck_layer.1} parent=23 // pred_check
        %p142 = pneg %p41
      $region26: #{bottleneck_layer.1} parent=23 // pred_check_branch
        %144 = sbr.rel (%p142) target = $region28
      $region27: #{bottleneck_layer.1} parent=23 // pred_region
        %p145 = scmp.lt.s32.totalorder %s16, 1
        %s146 = scalar_select %p145, %s16, 1
        %s147 = smul.addr %s146, 54
        %s148 = smul.addr %s147, 4
        %s149 = scalar_lea.vmem %s0, %s148
      $region28: #{bottleneck_layer.1} parent=23 // pred_fallthru
        _
    $region24: #{bottleneck_layer.1} parent=5 // pred_fallthru
      _
    %p150 = scmp.le.s32.totalorder 1, %s9
    %p151 = scmp.lt.s32.totalorder %s9, 5
    %p152 = pnand %p150, %p151
    %p153 = pneg %p152
    // Predicated region
    $region29: #{bottleneck_layer.1} parent=5 // pred_check
      _
    $region30: #{bottleneck_layer.1} parent=5 // pred_check_branch
      %155 = sbr.rel (%p152) target = $region32
    $region31: #{bottleneck_layer.1} parent=5 // pred_region
      %s156 = ssub.s32 %s9, 1
      %p157 = scmp.lt.s32.totalorder %s18, 1
      %s158 = scalar_select %p157, %s18, 1
      %s159 = smul.addr %s158, 54
      %s160 = smul.addr %s159, 4
      %s161 = scalar_lea.vmem %s0, %s160
      %p162 = pneg %p47
      %p163 = pneg %p44
      %p164 = pneg %p68
      %p165 = pneg %p65
      %p166 = pneg %p89
      %p167 = pneg %p86
      %p168 = pneg %p117
      %p169 = pneg %p114
      %s170 = smul.u32 16, %s19
      %p171 = scmp.lt.s32.totalorder %s18, 1
      %s172 = scalar_select %p171, %s18, 1
      %p173 = scmp.lt.s32.totalorder %s170, 31
      %s174 = scalar_select %p173, %s170, 31
      %s175 = smul.addr %s172, 32
      %s176 = sadd.s32 %s174, %s175
      %s177 = smul.addr %s176, 8
      %s178 = scalar_lea.vmem %s3, %s177
      %p179 = scmp.lt.s32.totalorder %s18, 1
      %s180 = scalar_select %p179, %s18, 1
      %s181 = smul.addr %s180, 54
      %s182 = smul.addr %s181, 4
      %s183 = scalar_lea.vmem %s0, %s182
      %s184 = smul.u32 16, %s19
      %p185 = scmp.lt.s32.totalorder %s18, 1
      %s186 = scalar_select %p185, %s18, 1
      %p187 = scmp.lt.s32.totalorder %s184, 31
      %s188 = scalar_select %p187, %s184, 31
      %s189 = smul.addr %s186, 32
      %s190 = sadd.s32 %s188, %s189
      %s191 = smul.addr %s190, 8
      %s192 = scalar_lea.vmem %s3, %s191
      %s193 = smul.u32 16, %s19
      %s195 = smul.u32 %s19, 8
      %s196 = smul.u32 %s195, 3
      %s197 = smul.addr %s196, 4
      %s198 = scalar_lea.vmem %s183, %s197
      %v199 = vld [vmem:[%s198] sm:$0xf]
      %v200 = vld [vmem:[%s198 + $0x4] sm:$0xf]
      %v201 = vld [vmem:[%s198 + $0xc] sm:$0xf]
      %v202 = vld [vmem:[%s198 + $0x10] sm:$0xf]
      %v203 = vld [vmem:[%s198 + $0x18] sm:$0xf]
      %v204 = vld [vmem:[%s198 + $0x1c] sm:$0xf]
      %v205 = vld [vmem:[%s198 + $0x24] sm:$0xf]
      %v206 = vld [vmem:[%s198 + $0x28] sm:$0xf]
      %v207 = vld [vmem:[%s198 + $0x30] sm:$0xf]
      %v208 = vld [vmem:[%s198 + $0x34] sm:$0xf]
      %v209 = vld [vmem:[%s198 + $0x3c] sm:$0xf]
      %v210 = vld [vmem:[%s198 + $0x40] sm:$0xf]
      %v211 = vld [vmem:[%s198 + $0x48] sm:$0xf]
      %v212 = vld [vmem:[%s198 + $0x4c] sm:$0xf]
      %v213 = vld [vmem:[%s198 + $0x54] sm:$0xf]
      %v214 = vld [vmem:[%s198 + $0x58] sm:$0xf]
      %v215 = vunpack.c.l.bf16 %v199
      %v216 = vunpack.c.l.bf16 %v200
      %v217 = vunpack.c.l.bf16 %v201
      %v218 = vunpack.c.l.bf16 %v202
      %v219 = vunpack.c.l.bf16 %v203
      %v220 = vunpack.c.l.bf16 %v204
      %v221 = vunpack.c.l.bf16 %v205
      %v222 = vunpack.c.l.bf16 %v206
      %v223 = vunpack.c.l.bf16 %v207
      %v224 = vunpack.c.l.bf16 %v208
      %v225 = vunpack.c.l.bf16 %v209
      %v226 = vunpack.c.l.bf16 %v210
      %v227 = vunpack.c.l.bf16 %v211
      %v228 = vunpack.c.l.bf16 %v212
      %v229 = vunpack.c.l.bf16 %v213
      %v230 = vunpack.c.l.bf16 %v214
      %vm231 = vcmask 31744
      %232 = vst.msk [vmem:[#allocation2] sm:$0xff] %vm231, %v215
      %233 = vst.msk [vmem:[#allocation2 + $0x8] sm:$0xff] %vm231, %v216
      %234 = vst.msk [vmem:[#allocation2 + $0x10] sm:$0xff] %vm231, %v217
      %235 = vst.msk [vmem:[#allocation2 + $0x18] sm:$0xff] %vm231, %v218
      %236 = vst.msk [vmem:[#allocation2 + $0x20] sm:$0xff] %vm231, %v219
      %237 = vst.msk [vmem:[#allocation2 + $0x28] sm:$0xff] %vm231, %v220
      %238 = vst.msk [vmem:[#allocation2 + $0x30] sm:$0xff] %vm231, %v221
      %239 = vst.msk [vmem:[#allocation2 + $0x38] sm:$0xff] %vm231, %v222
      %240 = vst.msk [vmem:[#allocation2 + $0x40] sm:$0xff] %vm231, %v223
      %241 = vst.msk [vmem:[#allocation2 + $0x48] sm:$0xff] %vm231, %v224
      %242 = vst.msk [vmem:[#allocation2 + $0x50] sm:$0xff] %vm231, %v225
      %243 = vst.msk [vmem:[#allocation2 + $0x58] sm:$0xff] %vm231, %v226
      %244 = vst.msk [vmem:[#allocation2 + $0x60] sm:$0xff] %vm231, %v227
      %245 = vst.msk [vmem:[#allocation2 + $0x68] sm:$0xff] %vm231, %v228
      %246 = vst.msk [vmem:[#allocation2 + $0x70] sm:$0xff] %vm231, %v229
      %247 = vst.msk [vmem:[#allocation2 + $0x78] sm:$0xff] %vm231, %v230
      %v248 = vld [vmem:[%s198] sm:$0xf]
      %v249 = vld [vmem:[%s198 + $0x4] sm:$0xf]
      %v250 = vld [vmem:[%s198 + $0x8] sm:$0x1]
      %v251 = vld [vmem:[%s198 + $0xc] sm:$0xf]
      %v252 = vld [vmem:[%s198 + $0x10] sm:$0xf]
      %v253 = vld [vmem:[%s198 + $0x14] sm:$0x1]
      %v254 = vld [vmem:[%s198 + $0x18] sm:$0xf]
      %v255 = vld [vmem:[%s198 + $0x1c] sm:$0xf]
      %v256 = vld [vmem:[%s198 + $0x20] sm:$0x1]
      %v257 = vld [vmem:[%s198 + $0x24] sm:$0xf]
      %v258 = vld [vmem:[%s198 + $0x28] sm:$0xf]
      %v259 = vld [vmem:[%s198 + $0x2c] sm:$0x1]
      %v260 = vld [vmem:[%s198 + $0x30] sm:$0xf]
      %v261 = vld [vmem:[%s198 + $0x34] sm:$0xf]
      %v262 = vld [vmem:[%s198 + $0x38] sm:$0x1]
      %v263 = vld [vmem:[%s198 + $0x3c] sm:$0xf]
      %v264 = vld [vmem:[%s198 + $0x40] sm:$0xf]
      %v265 = vld [vmem:[%s198 + $0x44] sm:$0x1]
      %v266 = vld [vmem:[%s198 + $0x48] sm:$0xf]
      %v267 = vld [vmem:[%s198 + $0x4c] sm:$0xf]
      %v268 = vld [vmem:[%s198 + $0x50] sm:$0x1]
      %v269 = vld [vmem:[%s198 + $0x54] sm:$0xf]
      %v270 = vld [vmem:[%s198 + $0x58] sm:$0xf]
      %v271 = vld [vmem:[%s198 + $0x5c] sm:$0x1]
      %v272 = vunpack.c.l.bf16 %v248
      %v273 = vunpack.c.l.bf16 %v249
      %v274 = vunpack.c.l.bf16 %v250
      %v275 = vunpack.c.l.bf16 %v251
      %v276 = vunpack.c.l.bf16 %v252
      %v277 = vunpack.c.l.bf16 %v253
      %v278 = vunpack.c.l.bf16 %v254
      %v279 = vunpack.c.l.bf16 %v255
      %v280 = vunpack.c.l.bf16 %v256
      %v281 = vunpack.c.l.bf16 %v257
      %v282 = vunpack.c.l.bf16 %v258
      %v283 = vunpack.c.l.bf16 %v259
      %v284 = vunpack.c.l.bf16 %v260
      %v285 = vunpack.c.l.bf16 %v261
      %v286 = vunpack.c.l.bf16 %v262
      %v287 = vunpack.c.l.bf16 %v263
      %v288 = vunpack.c.l.bf16 %v264
      %v289 = vunpack.c.l.bf16 %v265
      %v290 = vunpack.c.l.bf16 %v266
      %v291 = vunpack.c.l.bf16 %v267
      %v292 = vunpack.c.l.bf16 %v268
      %v293 = vunpack.c.l.bf16 %v269
      %v294 = vunpack.c.l.bf16 %v270
      %v295 = vunpack.c.l.bf16 %v271
      %320 = vrot.lane.b32.xlu0 %v272, 4
      %v321 = vpop.permute.xlu0 %320
      %322 = vrot.lane.b32.xlu0 %v273, 4
      %v323 = vpop.permute.xlu0 %322
      %324 = vrot.lane.b32.xlu0 %v274, 4
      %v325 = vpop.permute.xlu0 %324
      %326 = vrot.lane.b32.xlu0 %v275, 4
      %v327 = vpop.permute.xlu0 %326
      %328 = vrot.lane.b32.xlu0 %v276, 4
      %v329 = vpop.permute.xlu0 %328
      %330 = vrot.lane.b32.xlu0 %v277, 4
      %v331 = vpop.permute.xlu0 %330
      %332 = vrot.lane.b32.xlu0 %v278, 4
      %v333 = vpop.permute.xlu0 %332
      %334 = vrot.lane.b32.xlu0 %v279, 4
      %v335 = vpop.permute.xlu0 %334
      %336 = vrot.lane.b32.xlu0 %v280, 4
      %v337 = vpop.permute.xlu0 %336
      %338 = vrot.lane.b32.xlu0 %v281, 4
      %v339 = vpop.permute.xlu0 %338
      %340 = vrot.lane.b32.xlu0 %v282, 4
      %v341 = vpop.permute.xlu0 %340
      %342 = vrot.lane.b32.xlu0 %v283, 4
      %v343 = vpop.permute.xlu0 %342
      %344 = vrot.lane.b32.xlu0 %v284, 4
      %v345 = vpop.permute.xlu0 %344
      %346 = vrot.lane.b32.xlu0 %v285, 4
      %v347 = vpop.permute.xlu0 %346
      %348 = vrot.lane.b32.xlu0 %v286, 4
      %v349 = vpop.permute.xlu0 %348
      %350 = vrot.lane.b32.xlu0 %v287, 4
      %v351 = vpop.permute.xlu0 %350
      %352 = vrot.lane.b32.xlu0 %v288, 4
      %v353 = vpop.permute.xlu0 %352
      %354 = vrot.lane.b32.xlu0 %v289, 4
      %v355 = vpop.permute.xlu0 %354
      %356 = vrot.lane.b32.xlu0 %v290, 4
      %v357 = vpop.permute.xlu0 %356
      %358 = vrot.lane.b32.xlu0 %v291, 4
      %v359 = vpop.permute.xlu0 %358
      %360 = vrot.lane.b32.xlu0 %v292, 4
      %v361 = vpop.permute.xlu0 %360
      %362 = vrot.lane.b32.xlu0 %v293, 4
      %v363 = vpop.permute.xlu0 %362
      %364 = vrot.lane.b32.xlu0 %v294, 4
      %v365 = vpop.permute.xlu0 %364
      %366 = vrot.lane.b32.xlu0 %v295, 4
      %v367 = vpop.permute.xlu0 %366
      %vm392 = vcmask 64545
      %393 = vst.msk [vmem:[#allocation2 - $0x1] sm:$0xfe] %vm392, %v321
      %vm394 = vcmask 64544
      %395 = vst.msk [vmem:[#allocation2 + $0x7] sm:$0xff] %vm394, %v323
      %vm396 = vcmask 57376
      %397 = vst.msk [vmem:[#allocation2 + $0xf] sm:$0x1] %vm396, %v325
      %398 = vst.msk [vmem:[#allocation2 + $0xf] sm:$0xfe] %vm392, %v327
      %399 = vst.msk [vmem:[#allocation2 + $0x17] sm:$0xff] %vm394, %v329
      %400 = vst.msk [vmem:[#allocation2 + $0x1f] sm:$0x1] %vm396, %v331
      %401 = vst.msk [vmem:[#allocation2 + $0x1f] sm:$0xfe] %vm392, %v333
      %402 = vst.msk [vmem:[#allocation2 + $0x27] sm:$0xff] %vm394, %v335
      %403 = vst.msk [vmem:[#allocation2 + $0x2f] sm:$0x1] %vm396, %v337
      %404 = vst.msk [vmem:[#allocation2 + $0x2f] sm:$0xfe] %vm392, %v339
      %405 = vst.msk [vmem:[#allocation2 + $0x37] sm:$0xff] %vm394, %v341
      %406 = vst.msk [vmem:[#allocation2 + $0x3f] sm:$0x1] %vm396, %v343
      %407 = vst.msk [vmem:[#allocation2 + $0x3f] sm:$0xfe] %vm392, %v345
      %408 = vst.msk [vmem:[#allocation2 + $0x47] sm:$0xff] %vm394, %v347
      %409 = vst.msk [vmem:[#allocation2 + $0x4f] sm:$0x1] %vm396, %v349
      %410 = vst.msk [vmem:[#allocation2 + $0x4f] sm:$0xfe] %vm392, %v351
      %411 = vst.msk [vmem:[#allocation2 + $0x57] sm:$0xff] %vm394, %v353
      %412 = vst.msk [vmem:[#allocation2 + $0x5f] sm:$0x1] %vm396, %v355
      %413 = vst.msk [vmem:[#allocation2 + $0x5f] sm:$0xfe] %vm392, %v357
      %414 = vst.msk [vmem:[#allocation2 + $0x67] sm:$0xff] %vm394, %v359
      %415 = vst.msk [vmem:[#allocation2 + $0x6f] sm:$0x1] %vm396, %v361
      %416 = vst.msk [vmem:[#allocation2 + $0x6f] sm:$0xfe] %vm392, %v363
      %417 = vst.msk [vmem:[#allocation2 + $0x77] sm:$0xff] %vm394, %v365
      %418 = vst.msk [vmem:[#allocation2 + $0x7f] sm:$0x1] %vm396, %v367
      %v419 = vld [vmem:[%s198] sm:$0xe]
      %v420 = vld [vmem:[%s198 + $0x4] sm:$0xf]
      %v421 = vld [vmem:[%s198 + $0x8] sm:$0x1]
      %v422 = vld [vmem:[%s198 + $0xc] sm:$0xe]
      %v423 = vld [vmem:[%s198 + $0x10] sm:$0xf]
      %v424 = vld [vmem:[%s198 + $0x14] sm:$0x1]
      %v425 = vld [vmem:[%s198 + $0x18] sm:$0xe]
      %v426 = vld [vmem:[%s198 + $0x1c] sm:$0xf]
      %v427 = vld [vmem:[%s198 + $0x20] sm:$0x1]
      %v428 = vld [vmem:[%s198 + $0x24] sm:$0xe]
      %v429 = vld [vmem:[%s198 + $0x28] sm:$0xf]
      %v430 = vld [vmem:[%s198 + $0x2c] sm:$0x1]
      %v431 = vld [vmem:[%s198 + $0x30] sm:$0xe]
      %v432 = vld [vmem:[%s198 + $0x34] sm:$0xf]
      %v433 = vld [vmem:[%s198 + $0x38] sm:$0x1]
      %v434 = vld [vmem:[%s198 + $0x3c] sm:$0xe]
      %v435 = vld [vmem:[%s198 + $0x40] sm:$0xf]
      %v436 = vld [vmem:[%s198 + $0x44] sm:$0x1]
      %v437 = vld [vmem:[%s198 + $0x48] sm:$0xe]
      %v438 = vld [vmem:[%s198 + $0x4c] sm:$0xf]
      %v439 = vld [vmem:[%s198 + $0x50] sm:$0x1]
      %v440 = vld [vmem:[%s198 + $0x54] sm:$0xe]
      %v441 = vld [vmem:[%s198 + $0x58] sm:$0xf]
      %v442 = vld [vmem:[%s198 + $0x5c] sm:$0x1]
      %v443 = vunpack.c.l.bf16 %v419
      %v444 = vunpack.c.l.bf16 %v420
      %v445 = vunpack.c.l.bf16 %v421
      %v446 = vunpack.c.l.bf16 %v422
      %v447 = vunpack.c.l.bf16 %v423
      %v448 = vunpack.c.l.bf16 %v424
      %v449 = vunpack.c.l.bf16 %v425
      %v450 = vunpack.c.l.bf16 %v426
      %v451 = vunpack.c.l.bf16 %v427
      %v452 = vunpack.c.l.bf16 %v428
      %v453 = vunpack.c.l.bf16 %v429
      %v454 = vunpack.c.l.bf16 %v430
      %v455 = vunpack.c.l.bf16 %v431
      %v456 = vunpack.c.l.bf16 %v432
      %v457 = vunpack.c.l.bf16 %v433
      %v458 = vunpack.c.l.bf16 %v434
      %v459 = vunpack.c.l.bf16 %v435
      %v460 = vunpack.c.l.bf16 %v436
      %v461 = vunpack.c.l.bf16 %v437
      %v462 = vunpack.c.l.bf16 %v438
      %v463 = vunpack.c.l.bf16 %v439
      %v464 = vunpack.c.l.bf16 %v440
      %v465 = vunpack.c.l.bf16 %v441
      %v466 = vunpack.c.l.bf16 %v442
      %491 = vrot.lane.b32.xlu0 %v443, 8
      %v492 = vpop.permute.xlu0 %491
      %493 = vrot.lane.b32.xlu0 %v444, 8
      %v494 = vpop.permute.xlu0 %493
      %495 = vrot.lane.b32.xlu0 %v445, 8
      %v496 = vpop.permute.xlu0 %495
      %497 = vrot.lane.b32.xlu0 %v446, 8
      %v498 = vpop.permute.xlu0 %497
      %499 = vrot.lane.b32.xlu0 %v447, 8
      %v500 = vpop.permute.xlu0 %499
      %501 = vrot.lane.b32.xlu0 %v448, 8
      %v502 = vpop.permute.xlu0 %501
      %503 = vrot.lane.b32.xlu0 %v449, 8
      %v504 = vpop.permute.xlu0 %503
      %505 = vrot.lane.b32.xlu0 %v450, 8
      %v506 = vpop.permute.xlu0 %505
      %507 = vrot.lane.b32.xlu0 %v451, 8
      %v508 = vpop.permute.xlu0 %507
      %509 = vrot.lane.b32.xlu0 %v452, 8
      %v510 = vpop.permute.xlu0 %509
      %511 = vrot.lane.b32.xlu0 %v453, 8
      %v512 = vpop.permute.xlu0 %511
      %513 = vrot.lane.b32.xlu0 %v454, 8
      %v514 = vpop.permute.xlu0 %513
      %515 = vrot.lane.b32.xlu0 %v455, 8
      %v516 = vpop.permute.xlu0 %515
      %517 = vrot.lane.b32.xlu0 %v456, 8
      %v518 = vpop.permute.xlu0 %517
      %519 = vrot.lane.b32.xlu0 %v457, 8
      %v520 = vpop.permute.xlu0 %519
      %521 = vrot.lane.b32.xlu0 %v458, 8
      %v522 = vpop.permute.xlu0 %521
      %523 = vrot.lane.b32.xlu0 %v459, 8
      %v524 = vpop.permute.xlu0 %523
      %525 = vrot.lane.b32.xlu0 %v460, 8
      %v526 = vpop.permute.xlu0 %525
      %527 = vrot.lane.b32.xlu0 %v461, 8
      %v528 = vpop.permute.xlu0 %527
      %529 = vrot.lane.b32.xlu0 %v462, 8
      %v530 = vpop.permute.xlu0 %529
      %531 = vrot.lane.b32.xlu0 %v463, 8
      %v532 = vpop.permute.xlu0 %531
      %533 = vrot.lane.b32.xlu0 %v464, 8
      %v534 = vpop.permute.xlu0 %533
      %535 = vrot.lane.b32.xlu0 %v465, 8
      %v536 = vpop.permute.xlu0 %535
      %537 = vrot.lane.b32.xlu0 %v466, 8
      %v538 = vpop.permute.xlu0 %537
      %vm563 = vcmask 97346
      %564 = vst.msk [vmem:[#allocation2 - $0x2] sm:$0xfc] %vm563, %v492
      %vm565 = vcmask 97344
      %566 = vst.msk [vmem:[#allocation2 + $0x6] sm:$0xff] %vm565, %v494
      %vm567 = vcmask 91200
      %568 = vst.msk [vmem:[#allocation2 + $0xe] sm:$0x3] %vm567, %v496
      %569 = vst.msk [vmem:[#allocation2 + $0xe] sm:$0xfc] %vm563, %v498
      %570 = vst.msk [vmem:[#allocation2 + $0x16] sm:$0xff] %vm565, %v500
      %571 = vst.msk [vmem:[#allocation2 + $0x1e] sm:$0x3] %vm567, %v502
      %572 = vst.msk [vmem:[#allocation2 + $0x1e] sm:$0xfc] %vm563, %v504
      %573 = vst.msk [vmem:[#allocation2 + $0x26] sm:$0xff] %vm565, %v506
      %574 = vst.msk [vmem:[#allocation2 + $0x2e] sm:$0x3] %vm567, %v508
      %575 = vst.msk [vmem:[#allocation2 + $0x2e] sm:$0xfc] %vm563, %v510
      %576 = vst.msk [vmem:[#allocation2 + $0x36] sm:$0xff] %vm565, %v512
      %577 = vst.msk [vmem:[#allocation2 + $0x3e] sm:$0x3] %vm567, %v514
      %578 = vst.msk [vmem:[#allocation2 + $0x3e] sm:$0xfc] %vm563, %v516
      %579 = vst.msk [vmem:[#allocation2 + $0x46] sm:$0xff] %vm565, %v518
      %580 = vst.msk [vmem:[#allocation2 + $0x4e] sm:$0x3] %vm567, %v520
      %581 = vst.msk [vmem:[#allocation2 + $0x4e] sm:$0xfc] %vm563, %v522
      %582 = vst.msk [vmem:[#allocation2 + $0x56] sm:$0xff] %vm565, %v524
      %583 = vst.msk [vmem:[#allocation2 + $0x5e] sm:$0x3] %vm567, %v526
      %584 = vst.msk [vmem:[#allocation2 + $0x5e] sm:$0xfc] %vm563, %v528
      %585 = vst.msk [vmem:[#allocation2 + $0x66] sm:$0xff] %vm565, %v530
      %586 = vst.msk [vmem:[#allocation2 + $0x6e] sm:$0x3] %vm567, %v532
      %587 = vst.msk [vmem:[#allocation2 + $0x6e] sm:$0xfc] %vm563, %v534
      %588 = vst.msk [vmem:[#allocation2 + $0x76] sm:$0xff] %vm565, %v536
      %589 = vst.msk [vmem:[#allocation2 + $0x7e] sm:$0x3] %vm567, %v538
      %s590 = sadd.s32 %s195, 1
      %s591 = smul.u32 %s590, 3
      %s592 = smul.addr %s591, 4
      %s593 = scalar_lea.vmem %s183, %s592
      %v594 = vld [vmem:[%s593] sm:$0xf]
      %v595 = vld [vmem:[%s593 + $0x4] sm:$0xf]
      %v596 = vld [vmem:[%s593 + $0xc] sm:$0xf]
      %v597 = vld [vmem:[%s593 + $0x10] sm:$0xf]
      %v598 = vld [vmem:[%s593 + $0x18] sm:$0xf]
      %v599 = vld [vmem:[%s593 + $0x1c] sm:$0xf]
      %v600 = vld [vmem:[%s593 + $0x24] sm:$0xf]
      %v601 = vld [vmem:[%s593 + $0x28] sm:$0xf]
      %v602 = vld [vmem:[%s593 + $0x30] sm:$0xf]
      %v603 = vld [vmem:[%s593 + $0x34] sm:$0xf]
      %v604 = vld [vmem:[%s593 + $0x3c] sm:$0xf]
      %v605 = vld [vmem:[%s593 + $0x40] sm:$0xf]
      %v606 = vld [vmem:[%s593 + $0x48] sm:$0xf]
      %v607 = vld [vmem:[%s593 + $0x4c] sm:$0xf]
      %v608 = vld [vmem:[%s593 + $0x54] sm:$0xf]
      %v609 = vld [vmem:[%s593 + $0x58] sm:$0xf]
      %v610 = vunpack.c.l.bf16 %v594
      %v611 = vunpack.c.l.bf16 %v595
      %v612 = vunpack.c.l.bf16 %v596
      %v613 = vunpack.c.l.bf16 %v597
      %v614 = vunpack.c.l.bf16 %v598
      %v615 = vunpack.c.l.bf16 %v599
      %v616 = vunpack.c.l.bf16 %v600
      %v617 = vunpack.c.l.bf16 %v601
      %v618 = vunpack.c.l.bf16 %v602
      %v619 = vunpack.c.l.bf16 %v603
      %v620 = vunpack.c.l.bf16 %v604
      %v621 = vunpack.c.l.bf16 %v605
      %v622 = vunpack.c.l.bf16 %v606
      %v623 = vunpack.c.l.bf16 %v607
      %v624 = vunpack.c.l.bf16 %v608
      %v625 = vunpack.c.l.bf16 %v609
      %642 = vrot.lane.b32.xlu0 %v610, 12
      %v643 = vpop.permute.xlu0 %642
      %644 = vrot.lane.b32.xlu0 %v611, 12
      %v645 = vpop.permute.xlu0 %644
      %646 = vrot.lane.b32.xlu0 %v612, 12
      %v647 = vpop.permute.xlu0 %646
      %648 = vrot.lane.b32.xlu0 %v613, 12
      %v649 = vpop.permute.xlu0 %648
      %650 = vrot.lane.b32.xlu0 %v614, 12
      %v651 = vpop.permute.xlu0 %650
      %652 = vrot.lane.b32.xlu0 %v615, 12
      %v653 = vpop.permute.xlu0 %652
      %654 = vrot.lane.b32.xlu0 %v616, 12
      %v655 = vpop.permute.xlu0 %654
      %656 = vrot.lane.b32.xlu0 %v617, 12
      %v657 = vpop.permute.xlu0 %656
      %658 = vrot.lane.b32.xlu0 %v618, 12
      %v659 = vpop.permute.xlu0 %658
      %660 = vrot.lane.b32.xlu0 %v619, 12
      %v661 = vpop.permute.xlu0 %660
      %662 = vrot.lane.b32.xlu0 %v620, 12
      %v663 = vpop.permute.xlu0 %662
      %664 = vrot.lane.b32.xlu0 %v621, 12
      %v665 = vpop.permute.xlu0 %664
      %666 = vrot.lane.b32.xlu0 %v622, 12
      %v667 = vpop.permute.xlu0 %666
      %668 = vrot.lane.b32.xlu0 %v623, 12
      %v669 = vpop.permute.xlu0 %668
      %670 = vrot.lane.b32.xlu0 %v624, 12
      %v671 = vpop.permute.xlu0 %670
      %672 = vrot.lane.b32.xlu0 %v625, 12
      %v673 = vpop.permute.xlu0 %672
      %vm690 = vcmask 130144
      %691 = vst.msk [vmem:[#allocation2] sm:$0xff] %vm690, %v643
      %692 = vst.msk [vmem:[#allocation2 + $0x8] sm:$0xff] %vm690, %v645
      %693 = vst.msk [vmem:[#allocation2 + $0x10] sm:$0xff] %vm690, %v647
      %694 = vst.msk [vmem:[#allocation2 + $0x18] sm:$0xff] %vm690, %v649
      %695 = vst.msk [vmem:[#allocation2 + $0x20] sm:$0xff] %vm690, %v651
      %696 = vst.msk [vmem:[#allocation2 + $0x28] sm:$0xff] %vm690, %v653
      %697 = vst.msk [vmem:[#allocation2 + $0x30] sm:$0xff] %vm690, %v655
      %698 = vst.msk [vmem:[#allocation2 + $0x38] sm:$0xff] %vm690, %v657
      %699 = vst.msk [vmem:[#allocation2 + $0x40] sm:$0xff] %vm690, %v659
      %700 = vst.msk [vmem:[#allocation2 + $0x48] sm:$0xff] %vm690, %v661
      %701 = vst.msk [vmem:[#allocation2 + $0x50] sm:$0xff] %vm690, %v663
      %702 = vst.msk [vmem:[#allocation2 + $0x58] sm:$0xff] %vm690, %v665
      %703 = vst.msk [vmem:[#allocation2 + $0x60] sm:$0xff] %vm690, %v667
      %704 = vst.msk [vmem:[#allocation2 + $0x68] sm:$0xff] %vm690, %v669
      %705 = vst.msk [vmem:[#allocation2 + $0x70] sm:$0xff] %vm690, %v671
      %706 = vst.msk [vmem:[#allocation2 + $0x78] sm:$0xff] %vm690, %v673
      %v707 = vld [vmem:[%s593] sm:$0xf]
      %v708 = vld [vmem:[%s593 + $0x4] sm:$0xf]
      %v709 = vld [vmem:[%s593 + $0x8] sm:$0x1]
      %v710 = vld [vmem:[%s593 + $0xc] sm:$0xf]
      %v711 = vld [vmem:[%s593 + $0x10] sm:$0xf]
      %v712 = vld [vmem:[%s593 + $0x14] sm:$0x1]
      %v713 = vld [vmem:[%s593 + $0x18] sm:$0xf]
      %v714 = vld [vmem:[%s593 + $0x1c] sm:$0xf]
      %v715 = vld [vmem:[%s593 + $0x20] sm:$0x1]
      %v716 = vld [vmem:[%s593 + $0x24] sm:$0xf]
      %v717 = vld [vmem:[%s593 + $0x28] sm:$0xf]
      %v718 = vld [vmem:[%s593 + $0x2c] sm:$0x1]
      %v719 = vld [vmem:[%s593 + $0x30] sm:$0xf]
      %v720 = vld [vmem:[%s593 + $0x34] sm:$0xf]
      %v721 = vld [vmem:[%s593 + $0x38] sm:$0x1]
      %v722 = vld [vmem:[%s593 + $0x3c] sm:$0xf]
      %v723 = vld [vmem:[%s593 + $0x40] sm:$0xf]
      %v724 = vld [vmem:[%s593 + $0x44] sm:$0x1]
      %v725 = vld [vmem:[%s593 + $0x48] sm:$0xf]
      %v726 = vld [vmem:[%s593 + $0x4c] sm:$0xf]
      %v727 = vld [vmem:[%s593 + $0x50] sm:$0x1]
      %v728 = vld [vmem:[%s593 + $0x54] sm:$0xf]
      %v729 = vld [vmem:[%s593 + $0x58] sm:$0xf]
      %v730 = vld [vmem:[%s593 + $0x5c] sm:$0x1]
      %v731 = vunpack.c.l.bf16 %v707
      %v732 = vunpack.c.l.bf16 %v708
      %v733 = vunpack.c.l.bf16 %v709
      %v734 = vunpack.c.l.bf16 %v710
      %v735 = vunpack.c.l.bf16 %v711
      %v736 = vunpack.c.l.bf16 %v712
      %v737 = vunpack.c.l.bf16 %v713
      %v738 = vunpack.c.l.bf16 %v714
      %v739 = vunpack.c.l.bf16 %v715
      %v740 = vunpack.c.l.bf16 %v716
      %v741 = vunpack.c.l.bf16 %v717
      %v742 = vunpack.c.l.bf16 %v718
      %v743 = vunpack.c.l.bf16 %v719
      %v744 = vunpack.c.l.bf16 %v720
      %v745 = vunpack.c.l.bf16 %v721
      %v746 = vunpack.c.l.bf16 %v722
      %v747 = vunpack.c.l.bf16 %v723
      %v748 = vunpack.c.l.bf16 %v724
      %v749 = vunpack.c.l.bf16 %v725
      %v750 = vunpack.c.l.bf16 %v726
      %v751 = vunpack.c.l.bf16 %v727
      %v752 = vunpack.c.l.bf16 %v728
      %v753 = vunpack.c.l.bf16 %v729
      %v754 = vunpack.c.l.bf16 %v730
      %779 = vrot.lane.b32.xlu0 %v731, 16
      %v780 = vpop.permute.xlu0 %779
      %781 = vrot.lane.b32.xlu0 %v732, 16
      %v782 = vpop.permute.xlu0 %781
      %783 = vrot.lane.b32.xlu0 %v733, 16
      %v784 = vpop.permute.xlu0 %783
      %785 = vrot.lane.b32.xlu0 %v734, 16
      %v786 = vpop.permute.xlu0 %785
      %787 = vrot.lane.b32.xlu0 %v735, 16
      %v788 = vpop.permute.xlu0 %787
      %789 = vrot.lane.b32.xlu0 %v736, 16
      %v790 = vpop.permute.xlu0 %789
      %791 = vrot.lane.b32.xlu0 %v737, 16
      %v792 = vpop.permute.xlu0 %791
      %793 = vrot.lane.b32.xlu0 %v738, 16
      %v794 = vpop.permute.xlu0 %793
      %795 = vrot.lane.b32.xlu0 %v739, 16
      %v796 = vpop.permute.xlu0 %795
      %797 = vrot.lane.b32.xlu0 %v740, 16
      %v798 = vpop.permute.xlu0 %797
      %799 = vrot.lane.b32.xlu0 %v741, 16
      %v800 = vpop.permute.xlu0 %799
      %801 = vrot.lane.b32.xlu0 %v742, 16
      %v802 = vpop.permute.xlu0 %801
      %803 = vrot.lane.b32.xlu0 %v743, 16
      %v804 = vpop.permute.xlu0 %803
      %805 = vrot.lane.b32.xlu0 %v744, 16
      %v806 = vpop.permute.xlu0 %805
      %807 = vrot.lane.b32.xlu0 %v745, 16
      %v808 = vpop.permute.xlu0 %807
      %809 = vrot.lane.b32.xlu0 %v746, 16
      %v810 = vpop.permute.xlu0 %809
      %811 = vrot.lane.b32.xlu0 %v747, 16
      %v812 = vpop.permute.xlu0 %811
      %813 = vrot.lane.b32.xlu0 %v748, 16
      %v814 = vpop.permute.xlu0 %813
      %815 = vrot.lane.b32.xlu0 %v749, 16
      %v816 = vpop.permute.xlu0 %815
      %817 = vrot.lane.b32.xlu0 %v750, 16
      %v818 = vpop.permute.xlu0 %817
      %819 = vrot.lane.b32.xlu0 %v751, 16
      %v820 = vpop.permute.xlu0 %819
      %821 = vrot.lane.b32.xlu0 %v752, 16
      %v822 = vpop.permute.xlu0 %821
      %823 = vrot.lane.b32.xlu0 %v753, 16
      %v824 = vpop.permute.xlu0 %823
      %825 = vrot.lane.b32.xlu0 %v754, 16
      %v826 = vpop.permute.xlu0 %825
      %vm851 = vcmask 162945
      %852 = vst.msk [vmem:[#allocation2 - $0x1] sm:$0xfe] %vm851, %v780
      %vm853 = vcmask 162944
      %854 = vst.msk [vmem:[#allocation2 + $0x7] sm:$0xff] %vm853, %v782
      %vm855 = vcmask 155776
      %856 = vst.msk [vmem:[#allocation2 + $0xf] sm:$0x1] %vm855, %v784
      %857 = vst.msk [vmem:[#allocation2 + $0xf] sm:$0xfe] %vm851, %v786
      %858 = vst.msk [vmem:[#allocation2 + $0x17] sm:$0xff] %vm853, %v788
      %859 = vst.msk [vmem:[#allocation2 + $0x1f] sm:$0x1] %vm855, %v790
      %860 = vst.msk [vmem:[#allocation2 + $0x1f] sm:$0xfe] %vm851, %v792
      %861 = vst.msk [vmem:[#allocation2 + $0x27] sm:$0xff] %vm853, %v794
      %862 = vst.msk [vmem:[#allocation2 + $0x2f] sm:$0x1] %vm855, %v796
      %863 = vst.msk [vmem:[#allocation2 + $0x2f] sm:$0xfe] %vm851, %v798
      %864 = vst.msk [vmem:[#allocation2 + $0x37] sm:$0xff] %vm853, %v800
      %865 = vst.msk [vmem:[#allocation2 + $0x3f] sm:$0x1] %vm855, %v802
      %866 = vst.msk [vmem:[#allocation2 + $0x3f] sm:$0xfe] %vm851, %v804
      %867 = vst.msk [vmem:[#allocation2 + $0x47] sm:$0xff] %vm853, %v806
      %868 = vst.msk [vmem:[#allocation2 + $0x4f] sm:$0x1] %vm855, %v808
      %869 = vst.msk [vmem:[#allocation2 + $0x4f] sm:$0xfe] %vm851, %v810
      %870 = vst.msk [vmem:[#allocation2 + $0x57] sm:$0xff] %vm853, %v812
      %871 = vst.msk [vmem:[#allocation2 + $0x5f] sm:$0x1] %vm855, %v814
      %872 = vst.msk [vmem:[#allocation2 + $0x5f] sm:$0xfe] %vm851, %v816
      %873 = vst.msk [vmem:[#allocation2 + $0x67] sm:$0xff] %vm853, %v818
      %874 = vst.msk [vmem:[#allocation2 + $0x6f] sm:$0x1] %vm855, %v820
      %875 = vst.msk [vmem:[#allocation2 + $0x6f] sm:$0xfe] %vm851, %v822
      %876 = vst.msk [vmem:[#allocation2 + $0x77] sm:$0xff] %vm853, %v824
      %877 = vst.msk [vmem:[#allocation2 + $0x7f] sm:$0x1] %vm855, %v826
      %v878 = vld [vmem:[%s593] sm:$0xe]
      %v879 = vld [vmem:[%s593 + $0x4] sm:$0xf]
      %v880 = vld [vmem:[%s593 + $0x8] sm:$0x1]
      %v881 = vld [vmem:[%s593 + $0xc] sm:$0xe]
      %v882 = vld [vmem:[%s593 + $0x10] sm:$0xf]
      %v883 = vld [vmem:[%s593 + $0x14] sm:$0x1]
      %v884 = vld [vmem:[%s593 + $0x18] sm:$0xe]
      %v885 = vld [vmem:[%s593 + $0x1c] sm:$0xf]
      %v886 = vld [vmem:[%s593 + $0x20] sm:$0x1]
      %v887 = vld [vmem:[%s593 + $0x24] sm:$0xe]
      %v888 = vld [vmem:[%s593 + $0x28] sm:$0xf]
      %v889 = vld [vmem:[%s593 + $0x2c] sm:$0x1]
      %v890 = vld [vmem:[%s593 + $0x30] sm:$0xe]
      %v891 = vld [vmem:[%s593 + $0x34] sm:$0xf]
      %v892 = vld [vmem:[%s593 + $0x38] sm:$0x1]
      %v893 = vld [vmem:[%s593 + $0x3c] sm:$0xe]
      %v894 = vld [vmem:[%s593 + $0x40] sm:$0xf]
      %v895 = vld [vmem:[%s593 + $0x44] sm:$0x1]
      %v896 = vld [vmem:[%s593 + $0x48] sm:$0xe]
      %v897 = vld [vmem:[%s593 + $0x4c] sm:$0xf]
      %v898 = vld [vmem:[%s593 + $0x50] sm:$0x1]
      %v899 = vld [vmem:[%s593 + $0x54] sm:$0xe]
      %v900 = vld [vmem:[%s593 + $0x58] sm:$0xf]
      %v901 = vld [vmem:[%s593 + $0x5c] sm:$0x1]
      %v902 = vunpack.c.l.bf16 %v878
      %v903 = vunpack.c.l.bf16 %v879
      %v904 = vunpack.c.l.bf16 %v880
      %v905 = vunpack.c.l.bf16 %v881
      %v906 = vunpack.c.l.bf16 %v882
      %v907 = vunpack.c.l.bf16 %v883
      %v908 = vunpack.c.l.bf16 %v884
      %v909 = vunpack.c.l.bf16 %v885
      %v910 = vunpack.c.l.bf16 %v886
      %v911 = vunpack.c.l.bf16 %v887
      %v912 = vunpack.c.l.bf16 %v888
      %v913 = vunpack.c.l.bf16 %v889
      %v914 = vunpack.c.l.bf16 %v890
      %v915 = vunpack.c.l.bf16 %v891
      %v916 = vunpack.c.l.bf16 %v892
      %v917 = vunpack.c.l.bf16 %v893
      %v918 = vunpack.c.l.bf16 %v894
      %v919 = vunpack.c.l.bf16 %v895
      %v920 = vunpack.c.l.bf16 %v896
      %v921 = vunpack.c.l.bf16 %v897
      %v922 = vunpack.c.l.bf16 %v898
      %v923 = vunpack.c.l.bf16 %v899
      %v924 = vunpack.c.l.bf16 %v900
      %v925 = vunpack.c.l.bf16 %v901
      %950 = vrot.lane.b32.xlu0 %v902, 20
      %v951 = vpop.permute.xlu0 %950
      %952 = vrot.lane.b32.xlu0 %v903, 20
      %v953 = vpop.permute.xlu0 %952
      %954 = vrot.lane.b32.xlu0 %v904, 20
      %v955 = vpop.permute.xlu0 %954
      %956 = vrot.lane.b32.xlu0 %v905, 20
      %v957 = vpop.permute.xlu0 %956
      %958 = vrot.lane.b32.xlu0 %v906, 20
      %v959 = vpop.permute.xlu0 %958
      %960 = vrot.lane.b32.xlu0 %v907, 20
      %v961 = vpop.permute.xlu0 %960
      %962 = vrot.lane.b32.xlu0 %v908, 20
      %v963 = vpop.permute.xlu0 %962
      %964 = vrot.lane.b32.xlu0 %v909, 20
      %v965 = vpop.permute.xlu0 %964
      %966 = vrot.lane.b32.xlu0 %v910, 20
      %v967 = vpop.permute.xlu0 %966
      %968 = vrot.lane.b32.xlu0 %v911, 20
      %v969 = vpop.permute.xlu0 %968
      %970 = vrot.lane.b32.xlu0 %v912, 20
      %v971 = vpop.permute.xlu0 %970
      %972 = vrot.lane.b32.xlu0 %v913, 20
      %v973 = vpop.permute.xlu0 %972
      %974 = vrot.lane.b32.xlu0 %v914, 20
      %v975 = vpop.permute.xlu0 %974
      %976 = vrot.lane.b32.xlu0 %v915, 20
      %v977 = vpop.permute.xlu0 %976
      %978 = vrot.lane.b32.xlu0 %v916, 20
      %v979 = vpop.permute.xlu0 %978
      %980 = vrot.lane.b32.xlu0 %v917, 20
      %v981 = vpop.permute.xlu0 %980
      %982 = vrot.lane.b32.xlu0 %v918, 20
      %v983 = vpop.permute.xlu0 %982
      %984 = vrot.lane.b32.xlu0 %v919, 20
      %v985 = vpop.permute.xlu0 %984
      %986 = vrot.lane.b32.xlu0 %v920, 20
      %v987 = vpop.permute.xlu0 %986
      %988 = vrot.lane.b32.xlu0 %v921, 20
      %v989 = vpop.permute.xlu0 %988
      %990 = vrot.lane.b32.xlu0 %v922, 20
      %v991 = vpop.permute.xlu0 %990
      %992 = vrot.lane.b32.xlu0 %v923, 20
      %v993 = vpop.permute.xlu0 %992
      %994 = vrot.lane.b32.xlu0 %v924, 20
      %v995 = vpop.permute.xlu0 %994
      %996 = vrot.lane.b32.xlu0 %v925, 20
      %v997 = vpop.permute.xlu0 %996
      %vm1022 = vcmask 195746
      %1023 = vst.msk [vmem:[#allocation2 - $0x2] sm:$0xfc] %vm1022, %v951
      %vm1024 = vcmask 195744
      %1025 = vst.msk [vmem:[#allocation2 + $0x6] sm:$0xff] %vm1024, %v953
      %vm1026 = vcmask 189600
      %1027 = vst.msk [vmem:[#allocation2 + $0xe] sm:$0x3] %vm1026, %v955
      %1028 = vst.msk [vmem:[#allocation2 + $0xe] sm:$0xfc] %vm1022, %v957
      %1029 = vst.msk [vmem:[#allocation2 + $0x16] sm:$0xff] %vm1024, %v959
      %1030 = vst.msk [vmem:[#allocation2 + $0x1e] sm:$0x3] %vm1026, %v961
      %1031 = vst.msk [vmem:[#allocation2 + $0x1e] sm:$0xfc] %vm1022, %v963
      %1032 = vst.msk [vmem:[#allocation2 + $0x26] sm:$0xff] %vm1024, %v965
      %1033 = vst.msk [vmem:[#allocation2 + $0x2e] sm:$0x3] %vm1026, %v967
      %1034 = vst.msk [vmem:[#allocation2 + $0x2e] sm:$0xfc] %vm1022, %v969
      %1035 = vst.msk [vmem:[#allocation2 + $0x36] sm:$0xff] %vm1024, %v971
      %1036 = vst.msk [vmem:[#allocation2 + $0x3e] sm:$0x3] %vm1026, %v973
      %1037 = vst.msk [vmem:[#allocation2 + $0x3e] sm:$0xfc] %vm1022, %v975
      %1038 = vst.msk [vmem:[#allocation2 + $0x46] sm:$0xff] %vm1024, %v977
      %1039 = vst.msk [vmem:[#allocation2 + $0x4e] sm:$0x3] %vm1026, %v979
      %1040 = vst.msk [vmem:[#allocation2 + $0x4e] sm:$0xfc] %vm1022, %v981
      %1041 = vst.msk [vmem:[#allocation2 + $0x56] sm:$0xff] %vm1024, %v983
      %1042 = vst.msk [vmem:[#allocation2 + $0x5e] sm:$0x3] %vm1026, %v985
      %1043 = vst.msk [vmem:[#allocation2 + $0x5e] sm:$0xfc] %vm1022, %v987
      %1044 = vst.msk [vmem:[#allocation2 + $0x66] sm:$0xff] %vm1024, %v989
      %1045 = vst.msk [vmem:[#allocation2 + $0x6e] sm:$0x3] %vm1026, %v991
      %1046 = vst.msk [vmem:[#allocation2 + $0x6e] sm:$0xfc] %vm1022, %v993
      %1047 = vst.msk [vmem:[#allocation2 + $0x76] sm:$0xff] %vm1024, %v995
      %1048 = vst.msk [vmem:[#allocation2 + $0x7e] sm:$0x3] %vm1026, %v997
      %s1049 = sadd.s32 %s195, 2
      %s1050 = smul.u32 %s1049, 3
      %s1051 = smul.addr %s1050, 4
      %s1052 = scalar_lea.vmem %s183, %s1051
      %v1053 = vld [vmem:[%s1052] sm:$0xf]
      %v1054 = vld [vmem:[%s1052 + $0x4] sm:$0xf]
      %v1055 = vld [vmem:[%s1052 + $0xc] sm:$0xf]
      %v1056 = vld [vmem:[%s1052 + $0x10] sm:$0xf]
      %v1057 = vld [vmem:[%s1052 + $0x18] sm:$0xf]
      %v1058 = vld [vmem:[%s1052 + $0x1c] sm:$0xf]
      %v1059 = vld [vmem:[%s1052 + $0x24] sm:$0xf]
      %v1060 = vld [vmem:[%s1052 + $0x28] sm:$0xf]
      %v1061 = vld [vmem:[%s1052 + $0x30] sm:$0xf]
      %v1062 = vld [vmem:[%s1052 + $0x34] sm:$0xf]
      %v1063 = vld [vmem:[%s1052 + $0x3c] sm:$0xf]
      %v1064 = vld [vmem:[%s1052 + $0x40] sm:$0xf]
      %v1065 = vld [vmem:[%s1052 + $0x48] sm:$0xf]
      %v1066 = vld [vmem:[%s1052 + $0x4c] sm:$0xf]
      %v1067 = vld [vmem:[%s1052 + $0x54] sm:$0xf]
      %v1068 = vld [vmem:[%s1052 + $0x58] sm:$0xf]
      %v1069 = vunpack.c.l.bf16 %v1053
      %v1070 = vunpack.c.l.bf16 %v1054
      %v1071 = vunpack.c.l.bf16 %v1055
      %v1072 = vunpack.c.l.bf16 %v1056
      %v1073 = vunpack.c.l.bf16 %v1057
      %v1074 = vunpack.c.l.bf16 %v1058
      %v1075 = vunpack.c.l.bf16 %v1059
      %v1076 = vunpack.c.l.bf16 %v1060
      %v1077 = vunpack.c.l.bf16 %v1061
      %v1078 = vunpack.c.l.bf16 %v1062
      %v1079 = vunpack.c.l.bf16 %v1063
      %v1080 = vunpack.c.l.bf16 %v1064
      %v1081 = vunpack.c.l.bf16 %v1065
      %v1082 = vunpack.c.l.bf16 %v1066
      %v1083 = vunpack.c.l.bf16 %v1067
      %v1084 = vunpack.c.l.bf16 %v1068
      %1101 = vrot.lane.b32.xlu0 %v1069, 24
      %v1102 = vpop.permute.xlu0 %1101
      %1103 = vrot.lane.b32.xlu0 %v1070, 24
      %v1104 = vpop.permute.xlu0 %1103
      %1105 = vrot.lane.b32.xlu0 %v1071, 24
      %v1106 = vpop.permute.xlu0 %1105
      %1107 = vrot.lane.b32.xlu0 %v1072, 24
      %v1108 = vpop.permute.xlu0 %1107
      %1109 = vrot.lane.b32.xlu0 %v1073, 24
      %v1110 = vpop.permute.xlu0 %1109
      %1111 = vrot.lane.b32.xlu0 %v1074, 24
      %v1112 = vpop.permute.xlu0 %1111
      %1113 = vrot.lane.b32.xlu0 %v1075, 24
      %v1114 = vpop.permute.xlu0 %1113
      %1115 = vrot.lane.b32.xlu0 %v1076, 24
      %v1116 = vpop.permute.xlu0 %1115
      %1117 = vrot.lane.b32.xlu0 %v1077, 24
      %v1118 = vpop.permute.xlu0 %1117
      %1119 = vrot.lane.b32.xlu0 %v1078, 24
      %v1120 = vpop.permute.xlu0 %1119
      %1121 = vrot.lane.b32.xlu0 %v1079, 24
      %v1122 = vpop.permute.xlu0 %1121
      %1123 = vrot.lane.b32.xlu0 %v1080, 24
      %v1124 = vpop.permute.xlu0 %1123
      %1125 = vrot.lane.b32.xlu0 %v1081, 24
      %v1126 = vpop.permute.xlu0 %1125
      %1127 = vrot.lane.b32.xlu0 %v1082, 24
      %v1128 = vpop.permute.xlu0 %1127
      %1129 = vrot.lane.b32.xlu0 %v1083, 24
      %v1130 = vpop.permute.xlu0 %1129
      %1131 = vrot.lane.b32.xlu0 %v1084, 24
      %v1132 = vpop.permute.xlu0 %1131
      %vm1149 = vcmask 228544
      %1150 = vst.msk [vmem:[#allocation2] sm:$0xff] %vm1149, %v1102
      %1151 = vst.msk [vmem:[#allocation2 + $0x8] sm:$0xff] %vm1149, %v1104
      %1152 = vst.msk [vmem:[#allocation2 + $0x10] sm:$0xff] %vm1149, %v1106
      %1153 = vst.msk [vmem:[#allocation2 + $0x18] sm:$0xff] %vm1149, %v1108
      %1154 = vst.msk [vmem:[#allocation2 + $0x20] sm:$0xff] %vm1149, %v1110
      %1155 = vst.msk [vmem:[#allocation2 + $0x28] sm:$0xff] %vm1149, %v1112
      %1156 = vst.msk [vmem:[#allocation2 + $0x30] sm:$0xff] %vm1149, %v1114
      %1157 = vst.msk [vmem:[#allocation2 + $0x38] sm:$0xff] %vm1149, %v1116
      %1158 = vst.msk [vmem:[#allocation2 + $0x40] sm:$0xff] %vm1149, %v1118
      %1159 = vst.msk [vmem:[#allocation2 + $0x48] sm:$0xff] %vm1149, %v1120
      %1160 = vst.msk [vmem:[#allocation2 + $0x50] sm:$0xff] %vm1149, %v1122
      %1161 = vst.msk [vmem:[#allocation2 + $0x58] sm:$0xff] %vm1149, %v1124
      %1162 = vst.msk [vmem:[#allocation2 + $0x60] sm:$0xff] %vm1149, %v1126
      %1163 = vst.msk [vmem:[#allocation2 + $0x68] sm:$0xff] %vm1149, %v1128
      %1164 = vst.msk [vmem:[#allocation2 + $0x70] sm:$0xff] %vm1149, %v1130
      %1165 = vst.msk [vmem:[#allocation2 + $0x78] sm:$0xff] %vm1149, %v1132
      %v1166 = vld [vmem:[%s1052] sm:$0xf]
      %v1167 = vld [vmem:[%s1052 + $0x4] sm:$0xf]
      %v1168 = vld [vmem:[%s1052 + $0x8] sm:$0x1]
      %v1169 = vld [vmem:[%s1052 + $0xc] sm:$0xf]
      %v1170 = vld [vmem:[%s1052 + $0x10] sm:$0xf]
      %v1171 = vld [vmem:[%s1052 + $0x14] sm:$0x1]
      %v1172 = vld [vmem:[%s1052 + $0x18] sm:$0xf]
      %v1173 = vld [vmem:[%s1052 + $0x1c] sm:$0xf]
      %v1174 = vld [vmem:[%s1052 + $0x20] sm:$0x1]
      %v1175 = vld [vmem:[%s1052 + $0x24] sm:$0xf]
      %v1176 = vld [vmem:[%s1052 + $0x28] sm:$0xf]
      %v1177 = vld [vmem:[%s1052 + $0x2c] sm:$0x1]
      %v1178 = vld [vmem:[%s1052 + $0x30] sm:$0xf]
      %v1179 = vld [vmem:[%s1052 + $0x34] sm:$0xf]
      %v1180 = vld [vmem:[%s1052 + $0x38] sm:$0x1]
      %v1181 = vld [vmem:[%s1052 + $0x3c] sm:$0xf]
      %v1182 = vld [vmem:[%s1052 + $0x40] sm:$0xf]
      %v1183 = vld [vmem:[%s1052 + $0x44] sm:$0x1]
      %v1184 = vld [vmem:[%s1052 + $0x48] sm:$0xf]
      %v1185 = vld [vmem:[%s1052 + $0x4c] sm:$0xf]
      %v1186 = vld [vmem:[%s1052 + $0x50] sm:$0x1]
      %v1187 = vld [vmem:[%s1052 + $0x54] sm:$0xf]
      %v1188 = vld [vmem:[%s1052 + $0x58] sm:$0xf]
      %v1189 = vld [vmem:[%s1052 + $0x5c] sm:$0x1]
      %v1190 = vunpack.c.l.bf16 %v1166
      %v1191 = vunpack.c.l.bf16 %v1167
      %v1192 = vunpack.c.l.bf16 %v1168
      %v1193 = vunpack.c.l.bf16 %v1169
      %v1194 = vunpack.c.l.bf16 %v1170
      %v1195 = vunpack.c.l.bf16 %v1171
      %v1196 = vunpack.c.l.bf16 %v1172
      %v1197 = vunpack.c.l.bf16 %v1173
      %v1198 = vunpack.c.l.bf16 %v1174
      %v1199 = vunpack.c.l.bf16 %v1175
      %v1200 = vunpack.c.l.bf16 %v1176
      %v1201 = vunpack.c.l.bf16 %v1177
      %v1202 = vunpack.c.l.bf16 %v1178
      %v1203 = vunpack.c.l.bf16 %v1179
      %v1204 = vunpack.c.l.bf16 %v1180
      %v1205 = vunpack.c.l.bf16 %v1181
      %v1206 = vunpack.c.l.bf16 %v1182
      %v1207 = vunpack.c.l.bf16 %v1183
      %v1208 = vunpack.c.l.bf16 %v1184
      %v1209 = vunpack.c.l.bf16 %v1185
      %v1210 = vunpack.c.l.bf16 %v1186
      %v1211 = vunpack.c.l.bf16 %v1187
      %v1212 = vunpack.c.l.bf16 %v1188
      %v1213 = vunpack.c.l.bf16 %v1189
      %1238 = vrot.lane.b32.xlu0 %v1190, 28
      %v1239 = vpop.permute.xlu0 %1238
      %1240 = vrot.lane.b32.xlu0 %v1191, 28
      %v1241 = vpop.permute.xlu0 %1240
      %1242 = vrot.lane.b32.xlu0 %v1192, 28
      %v1243 = vpop.permute.xlu0 %1242
      %1244 = vrot.lane.b32.xlu0 %v1193, 28
      %v1245 = vpop.permute.xlu0 %1244
      %1246 = vrot.lane.b32.xlu0 %v1194, 28
      %v1247 = vpop.permute.xlu0 %1246
      %1248 = vrot.lane.b32.xlu0 %v1195, 28
      %v1249 = vpop.permute.xlu0 %1248
      %1250 = vrot.lane.b32.xlu0 %v1196, 28
      %v1251 = vpop.permute.xlu0 %1250
      %1252 = vrot.lane.b32.xlu0 %v1197, 28
      %v1253 = vpop.permute.xlu0 %1252
      %1254 = vrot.lane.b32.xlu0 %v1198, 28
      %v1255 = vpop.permute.xlu0 %1254
      %1256 = vrot.lane.b32.xlu0 %v1199, 28
      %v1257 = vpop.permute.xlu0 %1256
      %1258 = vrot.lane.b32.xlu0 %v1200, 28
      %v1259 = vpop.permute.xlu0 %1258
      %1260 = vrot.lane.b32.xlu0 %v1201, 28
      %v1261 = vpop.permute.xlu0 %1260
      %1262 = vrot.lane.b32.xlu0 %v1202, 28
      %v1263 = vpop.permute.xlu0 %1262
      %1264 = vrot.lane.b32.xlu0 %v1203, 28
      %v1265 = vpop.permute.xlu0 %1264
      %1266 = vrot.lane.b32.xlu0 %v1204, 28
      %v1267 = vpop.permute.xlu0 %1266
      %1268 = vrot.lane.b32.xlu0 %v1205, 28
      %v1269 = vpop.permute.xlu0 %1268
      %1270 = vrot.lane.b32.xlu0 %v1206, 28
      %v1271 = vpop.permute.xlu0 %1270
      %1272 = vrot.lane.b32.xlu0 %v1207, 28
      %v1273 = vpop.permute.xlu0 %1272
      %1274 = vrot.lane.b32.xlu0 %v1208, 28
      %v1275 = vpop.permute.xlu0 %1274
      %1276 = vrot.lane.b32.xlu0 %v1209, 28
      %v1277 = vpop.permute.xlu0 %1276
      %1278 = vrot.lane.b32.xlu0 %v1210, 28
      %v1279 = vpop.permute.xlu0 %1278
      %1280 = vrot.lane.b32.xlu0 %v1211, 28
      %v1281 = vpop.permute.xlu0 %1280
      %1282 = vrot.lane.b32.xlu0 %v1212, 28
      %v1283 = vpop.permute.xlu0 %1282
      %1284 = vrot.lane.b32.xlu0 %v1213, 28
      %v1285 = vpop.permute.xlu0 %1284
      %vm1310 = vcmask 261345
      %1311 = vst.msk [vmem:[#allocation2 - $0x1] sm:$0xfe] %vm1310, %v1239
      %vm1312 = vcmask 261344
      %1313 = vst.msk [vmem:[#allocation2 + $0x7] sm:$0xff] %vm1312, %v1241
      %vm1314 = vcmask 254176
      %1315 = vst.msk [vmem:[#allocation2 + $0xf] sm:$0x1] %vm1314, %v1243
      %1316 = vst.msk [vmem:[#allocation2 + $0xf] sm:$0xfe] %vm1310, %v1245
      %1317 = vst.msk [vmem:[#allocation2 + $0x17] sm:$0xff] %vm1312, %v1247
      %1318 = vst.msk [vmem:[#allocation2 + $0x1f] sm:$0x1] %vm1314, %v1249
      %1319 = vst.msk [vmem:[#allocation2 + $0x1f] sm:$0xfe] %vm1310, %v1251
      %1320 = vst.msk [vmem:[#allocation2 + $0x27] sm:$0xff] %vm1312, %v1253
      %1321 = vst.msk [vmem:[#allocation2 + $0x2f] sm:$0x1] %vm1314, %v1255
      %1322 = vst.msk [vmem:[#allocation2 + $0x2f] sm:$0xfe] %vm1310, %v1257
      %1323 = vst.msk [vmem:[#allocation2 + $0x37] sm:$0xff] %vm1312, %v1259
      %1324 = vst.msk [vmem:[#allocation2 + $0x3f] sm:$0x1] %vm1314, %v1261
      %1325 = vst.msk [vmem:[#allocation2 + $0x3f] sm:$0xfe] %vm1310, %v1263
      %1326 = vst.msk [vmem:[#allocation2 + $0x47] sm:$0xff] %vm1312, %v1265
      %1327 = vst.msk [vmem:[#allocation2 + $0x4f] sm:$0x1] %vm1314, %v1267
      %1328 = vst.msk [vmem:[#allocation2 + $0x4f] sm:$0xfe] %vm1310, %v1269
      %1329 = vst.msk [vmem:[#allocation2 + $0x57] sm:$0xff] %vm1312, %v1271
      %1330 = vst.msk [vmem:[#allocation2 + $0x5f] sm:$0x1] %vm1314, %v1273
      %1331 = vst.msk [vmem:[#allocation2 + $0x5f] sm:$0xfe] %vm1310, %v1275
      %1332 = vst.msk [vmem:[#allocation2 + $0x67] sm:$0xff] %vm1312, %v1277
      %1333 = vst.msk [vmem:[#allocation2 + $0x6f] sm:$0x1] %vm1314, %v1279
      %1334 = vst.msk [vmem:[#allocation2 + $0x6f] sm:$0xfe] %vm1310, %v1281
      %1335 = vst.msk [vmem:[#allocation2 + $0x77] sm:$0xff] %vm1312, %v1283
      %1336 = vst.msk [vmem:[#allocation2 + $0x7f] sm:$0x1] %vm1314, %v1285
      %v1337 = vld [vmem:[%s1052] sm:$0xe]
      %v1338 = vld [vmem:[%s1052 + $0x4] sm:$0xf]
      %v1339 = vld [vmem:[%s1052 + $0x8] sm:$0x1]
      %v1340 = vld [vmem:[%s1052 + $0xc] sm:$0xe]
      %v1341 = vld [vmem:[%s1052 + $0x10] sm:$0xf]
      %v1342 = vld [vmem:[%s1052 + $0x14] sm:$0x1]
      %v1343 = vld [vmem:[%s1052 + $0x18] sm:$0xe]
      %v1344 = vld [vmem:[%s1052 + $0x1c] sm:$0xf]
      %v1345 = vld [vmem:[%s1052 + $0x20] sm:$0x1]
      %v1346 = vld [vmem:[%s1052 + $0x24] sm:$0xe]
      %v1347 = vld [vmem:[%s1052 + $0x28] sm:$0xf]
      %v1348 = vld [vmem:[%s1052 + $0x2c] sm:$0x1]
      %v1349 = vld [vmem:[%s1052 + $0x30] sm:$0xe]
      %v1350 = vld [vmem:[%s1052 + $0x34] sm:$0xf]
      %v1351 = vld [vmem:[%s1052 + $0x38] sm:$0x1]
      %v1352 = vld [vmem:[%s1052 + $0x3c] sm:$0xe]
      %v1353 = vld [vmem:[%s1052 + $0x40] sm:$0xf]
      %v1354 = vld [vmem:[%s1052 + $0x44] sm:$0x1]
      %v1355 = vld [vmem:[%s1052 + $0x48] sm:$0xe]
      %v1356 = vld [vmem:[%s1052 + $0x4c] sm:$0xf]
      %v1357 = vld [vmem:[%s1052 + $0x50] sm:$0x1]
      %v1358 = vld [vmem:[%s1052 + $0x54] sm:$0xe]
      %v1359 = vld [vmem:[%s1052 + $0x58] sm:$0xf]
      %v1360 = vld [vmem:[%s1052 + $0x5c] sm:$0x1]
      %v1361 = vunpack.c.l.bf16 %v1337
      %v1362 = vunpack.c.l.bf16 %v1338
      %v1363 = vunpack.c.l.bf16 %v1339
      %v1364 = vunpack.c.l.bf16 %v1340
      %v1365 = vunpack.c.l.bf16 %v1341
      %v1366 = vunpack.c.l.bf16 %v1342
      %v1367 = vunpack.c.l.bf16 %v1343
      %v1368 = vunpack.c.l.bf16 %v1344
      %v1369 = vunpack.c.l.bf16 %v1345
      %v1370 = vunpack.c.l.bf16 %v1346
      %v1371 = vunpack.c.l.bf16 %v1347
      %v1372 = vunpack.c.l.bf16 %v1348
      %v1373 = vunpack.c.l.bf16 %v1349
      %v1374 = vunpack.c.l.bf16 %v1350
      %v1375 = vunpack.c.l.bf16 %v1351
      %v1376 = vunpack.c.l.bf16 %v1352
      %v1377 = vunpack.c.l.bf16 %v1353
      %v1378 = vunpack.c.l.bf16 %v1354
      %v1379 = vunpack.c.l.bf16 %v1355
      %v1380 = vunpack.c.l.bf16 %v1356
      %v1381 = vunpack.c.l.bf16 %v1357
      %v1382 = vunpack.c.l.bf16 %v1358
      %v1383 = vunpack.c.l.bf16 %v1359
      %v1384 = vunpack.c.l.bf16 %v1360
      %1409 = vrot.lane.b32.xlu0 %v1361, 32
      %v1410 = vpop.permute.xlu0 %1409
      %1411 = vrot.lane.b32.xlu0 %v1362, 32
      %v1412 = vpop.permute.xlu0 %1411
      %1413 = vrot.lane.b32.xlu0 %v1363, 32
      %v1414 = vpop.permute.xlu0 %1413
      %1415 = vrot.lane.b32.xlu0 %v1364, 32
      %v1416 = vpop.permute.xlu0 %1415
      %1417 = vrot.lane.b32.xlu0 %v1365, 32
      %v1418 = vpop.permute.xlu0 %1417
      %1419 = vrot.lane.b32.xlu0 %v1366, 32
      %v1420 = vpop.permute.xlu0 %1419
      %1421 = vrot.lane.b32.xlu0 %v1367, 32
      %v1422 = vpop.permute.xlu0 %1421
      %1423 = vrot.lane.b32.xlu0 %v1368, 32
      %v1424 = vpop.permute.xlu0 %1423
      %1425 = vrot.lane.b32.xlu0 %v1369, 32
      %v1426 = vpop.permute.xlu0 %1425
      %1427 = vrot.lane.b32.xlu0 %v1370, 32
      %v1428 = vpop.permute.xlu0 %1427
      %1429 = vrot.lane.b32.xlu0 %v1371, 32
      %v1430 = vpop.permute.xlu0 %1429
      %1431 = vrot.lane.b32.xlu0 %v1372, 32
      %v1432 = vpop.permute.xlu0 %1431
      %1433 = vrot.lane.b32.xlu0 %v1373, 32
      %v1434 = vpop.permute.xlu0 %1433
      %1435 = vrot.lane.b32.xlu0 %v1374, 32
      %v1436 = vpop.permute.xlu0 %1435
      %1437 = vrot.lane.b32.xlu0 %v1375, 32
      %v1438 = vpop.permute.xlu0 %1437
      %1439 = vrot.lane.b32.xlu0 %v1376, 32
      %v1440 = vpop.permute.xlu0 %1439
      %1441 = vrot.lane.b32.xlu0 %v1377, 32
      %v1442 = vpop.permute.xlu0 %1441
      %1443 = vrot.lane.b32.xlu0 %v1378, 32
      %v1444 = vpop.permute.xlu0 %1443
      %1445 = vrot.lane.b32.xlu0 %v1379, 32
      %v1446 = vpop.permute.xlu0 %1445
      %1447 = vrot.lane.b32.xlu0 %v1380, 32
      %v1448 = vpop.permute.xlu0 %1447
      %1449 = vrot.lane.b32.xlu0 %v1381, 32
      %v1450 = vpop.permute.xlu0 %1449
      %1451 = vrot.lane.b32.xlu0 %v1382, 32
      %v1452 = vpop.permute.xlu0 %1451
      %1453 = vrot.lane.b32.xlu0 %v1383, 32
      %v1454 = vpop.permute.xlu0 %1453
      %1455 = vrot.lane.b32.xlu0 %v1384, 32
      %v1456 = vpop.permute.xlu0 %1455
      %vm1481 = vcmask 294146
      %1482 = vst.msk [vmem:[#allocation2 - $0x2] sm:$0xfc] %vm1481, %v1410
      %vm1483 = vcmask 294144
      %1484 = vst.msk [vmem:[#allocation2 + $0x6] sm:$0xff] %vm1483, %v1412
      %vm1485 = vcmask 288000
      %1486 = vst.msk [vmem:[#allocation2 + $0xe] sm:$0x3] %vm1485, %v1414
      %1487 = vst.msk [vmem:[#allocation2 + $0xe] sm:$0xfc] %vm1481, %v1416
      %1488 = vst.msk [vmem:[#allocation2 + $0x16] sm:$0xff] %vm1483, %v1418
      %1489 = vst.msk [vmem:[#allocation2 + $0x1e] sm:$0x3] %vm1485, %v1420
      %1490 = vst.msk [vmem:[#allocation2 + $0x1e] sm:$0xfc] %vm1481, %v1422
      %1491 = vst.msk [vmem:[#allocation2 + $0x26] sm:$0xff] %vm1483, %v1424
      %1492 = vst.msk [vmem:[#allocation2 + $0x2e] sm:$0x3] %vm1485, %v1426
      %1493 = vst.msk [vmem:[#allocation2 + $0x2e] sm:$0xfc] %vm1481, %v1428
      %1494 = vst.msk [vmem:[#allocation2 + $0x36] sm:$0xff] %vm1483, %v1430
      %1495 = vst.msk [vmem:[#allocation2 + $0x3e] sm:$0x3] %vm1485, %v1432
      %1496 = vst.msk [vmem:[#allocation2 + $0x3e] sm:$0xfc] %vm1481, %v1434
      %1497 = vst.msk [vmem:[#allocation2 + $0x46] sm:$0xff] %vm1483, %v1436
      %1498 = vst.msk [vmem:[#allocation2 + $0x4e] sm:$0x3] %vm1485, %v1438
      %1499 = vst.msk [vmem:[#allocation2 + $0x4e] sm:$0xfc] %vm1481, %v1440
      %1500 = vst.msk [vmem:[#allocation2 + $0x56] sm:$0xff] %vm1483, %v1442
      %1501 = vst.msk [vmem:[#allocation2 + $0x5e] sm:$0x3] %vm1485, %v1444
      %1502 = vst.msk [vmem:[#allocation2 + $0x5e] sm:$0xfc] %vm1481, %v1446
      %1503 = vst.msk [vmem:[#allocation2 + $0x66] sm:$0xff] %vm1483, %v1448
      %1504 = vst.msk [vmem:[#allocation2 + $0x6e] sm:$0x3] %vm1485, %v1450
      %1505 = vst.msk [vmem:[#allocation2 + $0x6e] sm:$0xfc] %vm1481, %v1452
      %1506 = vst.msk [vmem:[#allocation2 + $0x76] sm:$0xff] %vm1483, %v1454
      %1507 = vst.msk [vmem:[#allocation2 + $0x7e] sm:$0x3] %vm1485, %v1456
      %v1508 = vld [vmem:[#allocation2] sm:$0xff]
      %v1509 = vld [vmem:[#allocation2 + $0x8] sm:$0xff]
      %v1510 = vld [vmem:[#allocation2 + $0x10] sm:$0xff]
      %v1511 = vld [vmem:[#allocation2 + $0x18] sm:$0xff]
      %v1512 = vld [vmem:[#allocation2 + $0x20] sm:$0xff]
      %v1513 = vld [vmem:[#allocation2 + $0x28] sm:$0xff]
      %v1514 = vld [vmem:[#allocation2 + $0x30] sm:$0xff]
      %v1515 = vld [vmem:[#allocation2 + $0x38] sm:$0xff]
      %v1516 = vld [vmem:[#allocation2 + $0x40] sm:$0xff]
      %v1517 = vld [vmem:[#allocation2 + $0x48] sm:$0xff]
      %v1518 = vld [vmem:[#allocation2 + $0x50] sm:$0xff]
      %v1519 = vld [vmem:[#allocation2 + $0x58] sm:$0xff]
      %v1520 = vld [vmem:[#allocation2 + $0x60] sm:$0xff]
      %v1521 = vld [vmem:[#allocation2 + $0x68] sm:$0xff]
      %v1522 = vld [vmem:[#allocation2 + $0x70] sm:$0xff]
      %v1523 = vld [vmem:[#allocation2 + $0x78] sm:$0xff]
      %v1524 = vpack.c.bf16 %v1509, %v1508
      %v1525 = vpack.c.bf16 %v1511, %v1510
      %v1526 = vpack.c.bf16 %v1513, %v1512
      %v1527 = vpack.c.bf16 %v1515, %v1514
      %v1528 = vpack.c.bf16 %v1517, %v1516
      %v1529 = vpack.c.bf16 %v1519, %v1518
      %v1530 = vpack.c.bf16 %v1521, %v1520
      %v1531 = vpack.c.bf16 %v1523, %v1522
      %v1532 = vld [vmem:[%s1] sm:$0xf]
      %v1533 = vld [vmem:[%s1 + $0x4] sm:$0xf]
      %v1534 = vld [vmem:[%s1 + $0x8] sm:$0xf]
      %v1535 = vld [vmem:[%s1 + $0xc] sm:$0xf]
      %v1536 = vld [vmem:[%s1 + $0x10] sm:$0x3]
      %v1537 = vld [vmem:[%s2] sm:$0x1]
      %v1539 = vperm.slane %v1537, 0
      %v1546 = vunpack.c.l.b16 %v1532
      %v1547 = vunpack.c.l.b16 %v1533
      %v1548 = vunpack.c.l.b16 %v1534
      %v1549 = vunpack.c.l.b16 %v1535
      %v1550 = vunpack.c.l.b16 %v1536
      %v1551 = vpack.c.b16 %v1547, %v1546
      %v1552 = vpack.c.b16 %v1549, %v1548
      %v1553 = vpack.c.b16 %v1550, %v1550
      %vm1556 = vcmask 293888
      %v1558 = vsel %vm1556, %v1524, 0
      %v1561 = vsel %vm1556, %v1525, 0
      %v1564 = vsel %vm1556, %v1526, 0
      %v1567 = vsel %vm1556, %v1527, 0
      %v1570 = vsel %vm1556, %v1528, 0
      %v1573 = vsel %vm1556, %v1529, 0
      %v1576 = vsel %vm1556, %v1530, 0
      %v1579 = vsel %vm1556, %v1531, 0
      %vm1581 = vcmask 1041408
      %v1583 = vsel %vm1581, %v1553, 0
      %1585 = vmatpush.bf16.msra.mxu0 0
      %1586 = vmatpush.bf16.msra.mxu0 0
      %1587 = vmatpush.bf16.msra.mxu0 0
      %1588 = vmatpush.bf16.msra.mxu0 0
      %1589 = vmatpush.bf16.msra.mxu0 0
      %1590 = vmatpush.bf16.msra.mxu0 %v1583
      %1591 = vmatpush.bf16.msra.mxu0 %v1552
      %1592 = vmatpush.bf16.msra.mxu0 %v1551
      %1593 = vmatmul.bf16.gmra.mxu0 %v1558
      %v1594 = vpop.f32.mrf.mxu0
      %v1595 = vadd.f32 %v1539, %v1594
      %v1596 = vpop.f32.mrf.mxu0
      %v1597 = vadd.f32 %v1539, %v1596
      %1598 = vmatmul.bf16.gmra.mxu0 %v1561
      %v1599 = vpop.f32.mrf.mxu0
      %v1600 = vadd.f32 %v1539, %v1599
      %v1601 = vpop.f32.mrf.mxu0
      %v1602 = vadd.f32 %v1539, %v1601
      %1603 = vmatmul.bf16.gmra.mxu0 %v1564
      %v1604 = vpop.f32.mrf.mxu0
      %v1605 = vadd.f32 %v1539, %v1604
      %v1606 = vpop.f32.mrf.mxu0
      %v1607 = vadd.f32 %v1539, %v1606
      %1608 = vmatmul.bf16.gmra.mxu0 %v1567
      %v1609 = vpop.f32.mrf.mxu0
      %v1610 = vadd.f32 %v1539, %v1609
      %v1611 = vpop.f32.mrf.mxu0
      %v1612 = vadd.f32 %v1539, %v1611
      %1613 = vmatmul.bf16.gmra.mxu0 %v1570
      %v1614 = vpop.f32.mrf.mxu0
      %v1615 = vadd.f32 %v1539, %v1614
      %v1616 = vpop.f32.mrf.mxu0
      %v1617 = vadd.f32 %v1539, %v1616
      %1618 = vmatmul.bf16.gmra.mxu0 %v1573
      %v1619 = vpop.f32.mrf.mxu0
      %v1620 = vadd.f32 %v1539, %v1619
      %v1621 = vpop.f32.mrf.mxu0
      %v1622 = vadd.f32 %v1539, %v1621
      %1623 = vmatmul.bf16.gmra.mxu0 %v1576
      %v1624 = vpop.f32.mrf.mxu0
      %v1625 = vadd.f32 %v1539, %v1624
      %v1626 = vpop.f32.mrf.mxu0
      %v1627 = vadd.f32 %v1539, %v1626
      %1628 = vmatmul.bf16.gmra.mxu0 %v1579
      %v1629 = vpop.f32.mrf.mxu0
      %v1630 = vadd.f32 %v1539, %v1629
      %v1631 = vpop.f32.mrf.mxu0
      %v1632 = vadd.f32 %v1539, %v1631
      %1633 = vdwg.mxu0
      %v1634 = vmax.f32 %v1595, 0.0
      %v1635 = vmax.f32 %v1597, 0.0
      %v1636 = vmax.f32 %v1600, 0.0
      %v1637 = vmax.f32 %v1602, 0.0
      %v1638 = vmax.f32 %v1605, 0.0
      %v1639 = vmax.f32 %v1607, 0.0
      %v1640 = vmax.f32 %v1610, 0.0
      %v1641 = vmax.f32 %v1612, 0.0
      %v1642 = vmax.f32 %v1615, 0.0
      %v1643 = vmax.f32 %v1617, 0.0
      %v1644 = vmax.f32 %v1620, 0.0
      %v1645 = vmax.f32 %v1622, 0.0
      %v1646 = vmax.f32 %v1625, 0.0
      %v1647 = vmax.f32 %v1627, 0.0
      %v1648 = vmax.f32 %v1630, 0.0
      %v1649 = vmax.f32 %v1632, 0.0
      %1650 = vst [vmem:[%s192] sm:$0xff] %v1634
      %1651 = vst [vmem:[%s192 + $0x8] sm:$0xff] %v1635
      %1652 = vst [vmem:[%s192 + $0x10] sm:$0xff] %v1636
      %1653 = vst [vmem:[%s192 + $0x18] sm:$0xff] %v1637
      %1654 = vst [vmem:[%s192 + $0x20] sm:$0xff] %v1638
      %1655 = vst [vmem:[%s192 + $0x28] sm:$0xff] %v1639
      %1656 = vst [vmem:[%s192 + $0x30] sm:$0xff] %v1640
      %1657 = vst [vmem:[%s192 + $0x38] sm:$0xff] %v1641
      %1658 = vst [vmem:[%s192 + $0x40] sm:$0xff] %v1642
      %1659 = vst [vmem:[%s192 + $0x48] sm:$0xff] %v1643
      %1660 = vst [vmem:[%s192 + $0x50] sm:$0xff] %v1644
      %1661 = vst [vmem:[%s192 + $0x58] sm:$0xff] %v1645
      %1662 = vst [vmem:[%s192 + $0x60] sm:$0xff] %v1646
      %1663 = vst [vmem:[%s192 + $0x68] sm:$0xff] %v1647
      %1664 = vst [vmem:[%s192 + $0x70] sm:$0xff] %v1648
      %1665 = vst [vmem:[%s192 + $0x78] sm:$0xff] %v1649
      %s1666 = smul.u32 16, %s19
      %p1667 = scmp.lt.s32.totalorder %s18, 1
      %s1668 = scalar_select %p1667, %s18, 1
      %p1669 = scmp.lt.s32.totalorder %s1666, 31
      %s1670 = scalar_select %p1669, %s1666, 31
      %s1671 = smul.addr %s1668, 32
      %s1672 = sadd.s32 %s1670, %s1671
      %s1673 = smul.addr %s1672, 8
      %s1674 = scalar_lea.vmem %s3, %s1673
      // Predicated region
      $region33: #{bottleneck_layer.1} parent=31 // pred_check
        %p1675 = pneg %p114
      $region34: #{bottleneck_layer.1} parent=31 // pred_check_branch
        %1677 = sbr.rel (%p1675) target = $region36
      $region35: #{bottleneck_layer.1} parent=31 // pred_region
        %s1678 = smul.u32 16, %s19
      $region36: #{bottleneck_layer.1} parent=31 // pred_fallthru
        _
    $region32: #{bottleneck_layer.1} parent=5 // pred_fallthru
      _
    %p1679 = scmp.le.s32.totalorder 2, %s9
    // Predicated region
    $region37: #{bottleneck_layer.1} parent=5 // pred_check
      %p1680 = pneg %p1679
    $region38: #{bottleneck_layer.1} parent=5 // pred_check_branch
      %1682 = sbr.rel (%p1680) target = $region40
    $region39: #{bottleneck_layer.1} parent=5 // pred_region
      %s1683 = ssub.s32 %s9, 2
      // Predicated region
      $region41: #{bottleneck_layer.1} parent=39 // pred_check
        %p1684 = pneg %p120
      $region42: #{bottleneck_layer.1} parent=39 // pred_check_branch
        %1686 = sbr.rel (%p1684) target = $region44
      $region43: #{bottleneck_layer.1} parent=39 // pred_region
        %s1687 = smul.u32 16, %s21
        %p1688 = scmp.lt.s32.totalorder %s20, 1
        %s1689 = scalar_select %p1688, %s20, 1
        %p1690 = scmp.lt.s32.totalorder %s1687, 31
        %s1691 = scalar_select %p1690, %s1687, 31
        %s1692 = smul.addr %s1689, 32
        %s1693 = sadd.s32 %s1691, %s1692
        %s1694 = smul.addr %s1693, 8
        %s1695 = scalar_lea.vmem %s3, %s1694
      $region44: #{bottleneck_layer.1} parent=39 // pred_fallthru
        _
    $region40: #{bottleneck_layer.1} parent=5 // pred_fallthru
      _
  $region6: #{bottleneck_layer.1} parent=0 // loop_footer
    %s13 = sadd.s32 1, %s9
  $region7: #{bottleneck_layer.1} parent=0 // loop_footer_branch
    %8 = sbr.rel target = $region3
  $region8: #{bottleneck_layer.1} parent=0 // loop_exit
    _

</llo_original>
